<compile_context>
chip_gen: v7x
topology: tpu7x:2x2x1
jax: 0.10.0
libtpu: 0.0.40
codegen_flags: <defaults>
</compile_context>

<pallas_src>
import functools

import jax
import jax.numpy as jnp
from jax.experimental import pallas as pl
from jax.experimental.pallas import tpu as pltpu

LN_EPS = 1e-5  # PyTorch nn.LayerNorm default


def _layer_norm_relu(y, gamma, beta):
    """LayerNorm (over last dim) -> affine -> ReLU on an (R, width) tile."""
    mu = jnp.mean(y, axis=-1, keepdims=True)
    var = jnp.mean((y - mu) ** 2, axis=-1, keepdims=True)
    yn = (y - mu) * jax.lax.rsqrt(var + LN_EPS)
    return jnp.maximum(yn * gamma + beta, 0.0)


def attention_kernel(sgm_ref, velo_ref,
                     w_sgm_ref, p_sgm_ref,
                     w_velo_ref, p_velo_ref,
                     out_ref, *, c, ch):
    bt, n, d = sgm_ref.shape
    r = bt * n

    # Flatten (Bt, N, D) -> (Bt*N, D): lane dim unchanged, sublanes merged, so
    # the fused projection matmuls see M = Bt*N rows instead of N.
    x_sgm = sgm_ref[...].reshape(r, d)
    x_velo = velo_ref[...].reshape(r, d)

    p_sgm = p_sgm_ref[...]    # (3, P): rows = [bias, gamma, beta], lane-packed
    p_velo = p_velo_ref[...]

    # Fused projections: [Wq | Wv2] on sgm, [Wk | Wv1] on velo (P >= 128 lanes).
    y_sgm = jnp.dot(x_sgm, w_sgm_ref[...],
                    preferred_element_type=jnp.float32) + p_sgm[0:1, :]
    y_velo = jnp.dot(x_velo, w_velo_ref[...],
                     preferred_element_type=jnp.float32) + p_velo[0:1, :]

    # Per-branch LayerNorm + ReLU on the sliced columns (different widths).
    q = _layer_norm_relu(y_sgm[:, :c], p_sgm[1:2, :c], p_sgm[2:3, :c])
    v2 = _layer_norm_relu(y_sgm[:, c:c + ch],
                          p_sgm[1:2, c:c + ch], p_sgm[2:3, c:c + ch])
    k = _layer_norm_relu(y_velo[:, :c], p_velo[1:2, :c], p_velo[2:3, :c])
    v1 = _layer_norm_relu(y_velo[:, c:c + ch],
                          p_velo[1:2, c:c + ch], p_velo[2:3, c:c + ch])

    # Per-batch attention. Batched einsum = dot_general contracting feature
    # dims, so k is consumed transposed by the MXU (no explicit k.T relayout).
    q = q.reshape(bt, n, c)
    k = k.reshape(bt, n, c)
    v1 = v1.reshape(bt, n, ch)
    v2 = v2.reshape(bt, n, ch)

    scores = jnp.einsum("bnc,bmc->bnm", q, k,
                        preferred_element_type=jnp.float32)       # (Bt, N, N)
    # NOTE: no 1/sqrt(d_k) scaling, matching the original module.
    scores = scores - jnp.max(scores, axis=-1, keepdims=True)
    e = jnp.exp(scores)
    attn = e * pl.reciprocal(jnp.sum(e, axis=-1, keepdims=True), approx=True)
    av = jnp.einsum("bnm,bmc->bnc", attn, v1,
                    preferred_element_type=jnp.float32)           # (Bt, N, Ch)

    # Store branches directly into output slices (no jnp.concatenate relayout).
    out_ref[:, :, :ch] = v2.astype(out_ref.dtype)
    out_ref[:, :, ch:] = av.astype(out_ref.dtype)
    # TODO(synk): for realistic voxel counts (N in the thousands) the (N, N)
    # scores must be flash-tiled over a kv grid axis with an online softmax
    # (running max/sum scratch) -- mandatory within v7x's 64 MiB VMEM.


def _pack_branch(w_a, b_a, g_a, beta_a, w_b, b_b, g_b, beta_b, p):
    """Pack two Linear+LN branches into one fused weight + one (3, P) param array."""
    d, c = w_a.shape
    ch = w_b.shape[1]
    w = jnp.zeros((d, p), jnp.float32)
    w = w.at[:, :c].set(w_a).at[:, c:c + ch].set(w_b)
    prm = jnp.zeros((3, p), jnp.float32)
    prm = prm.at[0, :c].set(b_a.reshape(-1)).at[0, c:c + ch].set(b_b.reshape(-1))
    prm = prm.at[1, :c].set(g_a.reshape(-1)).at[1, c:c + ch].set(g_b.reshape(-1))
    prm = prm.at[2, :c].set(beta_a.reshape(-1)).at[2, c:c + ch].set(beta_b.reshape(-1))
    return w, prm


def attention_module_relu(sgm, velo, params, *, bt=None):
    """sgm, velo: (B, N, 1024) float32. Returns (B, N, C)."""
    B, N, D = sgm.shape
    C = params["wq"].shape[1]
    Ch = C // 2
    P = max(128, ((C + Ch + 127) // 128) * 128)  # fused projection width (lane-padded)

    if bt is None:
        # Fill the MXU M-dimension: target >= 256 rows per step (v6e/v7x
        # 256x256 MXU; also covers v5e's 128). Must divide B.
        bt = max(1, min(B, max(1, 256 // max(N, 1))))
        while B % bt:
            bt -= 1
        # v7x megacore: keep >= 2 parallel grid steps when that still leaves
        # >= 256 rows per step; otherwise filling M wins.
        if B // bt < 2 and B >= 2 and (B // 2) * N >= 256:
            bt = B // 2
            while B % bt:
                bt -= 1

    w_sgm, p_sgm = _pack_branch(
        params["wq"], params["bq"], params["gq"], params["btq"],
        params["wv2"], params["bv2"], params["gv2"], params["btv2"], P)
    w_velo, p_velo = _pack_branch(
        params["wk"], params["bk"], params["gk"], params["btk"],
        params["wv1"], params["bv1"], params["gv1"], params["btv1"], P)

    grid = (B // bt,)

    in_specs = [
        pl.BlockSpec((bt, N, D), lambda b: (b, 0, 0)),   # sgm block
        pl.BlockSpec((bt, N, D), lambda b: (b, 0, 0)),   # velo block
        pl.BlockSpec((D, P), lambda b: (0, 0)),          # fused [Wq | Wv2]
        pl.BlockSpec((3, P), lambda b: (0, 0)),          # packed [bias; gamma; beta] (sgm)
        pl.BlockSpec((D, P), lambda b: (0, 0)),          # fused [Wk | Wv1]
        pl.BlockSpec((3, P), lambda b: (0, 0)),          # packed params (velo)
    ]

    # Rough VMEM estimate (double-buffered operands + intermediates), with 2x
    # headroom; clamped so the scoped limit is valid on v5e/v6e/v7x.
    est_bytes = 4 * (2 * 2 * bt * N * D      # sgm + velo, double-buffered
                     + 2 * 2 * D * P         # two fused weights, double-buffered
                     + 2 * 2 * 8 * P         # packed LN params (8-sublane padded)
                     + 2 * bt * N * C        # output, double-buffered
                     + 6 * bt * N * P        # projection / LN intermediates
                     + 3 * bt * N * N)       # scores / softmax temporaries
    vmem_limit = int(min(max(2 * est_bytes, 16 << 20), 48 << 20))

    out = pl.pallas_call(
        functools.partial(attention_kernel, c=C, ch=Ch),
        out_shape=jax.ShapeDtypeStruct((B, N, C), jnp.float32),
        grid_spec=pltpu.PrefetchScalarGridSpec(
            num_scalar_prefetch=0,
            grid=grid,
            in_specs=in_specs,
            out_specs=pl.BlockSpec((bt, N, C), lambda b: (b, 0, 0)),
        ),
        compiler_params=pltpu.CompilerParams(
            dimension_semantics=("parallel",),
            vmem_limit_bytes=vmem_limit),
    )(sgm, velo, w_sgm, p_sgm, w_velo, p_velo)
    return out


def reference_jax(sgm, velo, params):
    """Pure-JAX reference for correctness checking."""
    def branch(x, w, b, g, beta):
        y = x @ w + b
        mu = jnp.mean(y, axis=-1, keepdims=True)
        var = jnp.mean((y - mu) ** 2, axis=-1, keepdims=True)
        yn = (y - mu) / jnp.sqrt(var + LN_EPS) * g + beta
        return jnp.maximum(yn, 0.0)

    q = branch(sgm, params["wq"], params["bq"], params["gq"], params["btq"])
    k = branch(velo, params["wk"], params["bk"], params["gk"], params["btk"])
    v1 = branch(velo, params["wv1"], params["bv1"], params["gv1"], params["btv1"])
    v2 = branch(sgm, params["wv2"], params["bv2"], params["gv2"], params["btv2"])
    attn = jax.nn.softmax(jnp.einsum("bnc,bmc->bnm", q, k), axis=2)
    av = jnp.einsum("bnm,bmc->bnc", attn, v1)
    return jnp.concatenate([v2, av], axis=2)


def init_params(key, in_channels, d_in=1024):
    """Deterministic synthetic parameters (module's __init__ defines shapes)."""
    C, Ch = in_channels, in_channels // 2
    keys = jax.random.split(key, 8)
    scale = 1.0 / jnp.sqrt(d_in)
    return {
        # Linear weights stored (D, C) so x @ W; biases / LN params as (1, C).
        "wq": jax.random.uniform(keys[0], (d_in, C), jnp.float32, -scale, scale),
        "bq": jax.random.uniform(keys[1], (1, C), jnp.float32, -scale, scale),
        "gq": jnp.ones((1, C), jnp.float32),
        "btq": jnp.zeros((1, C), jnp.float32),
        "wk": jax.random.uniform(keys[2], (d_in, C), jnp.float32, -scale, scale),
        "bk": jax.random.uniform(keys[3], (1, C), jnp.float32, -scale, scale),
        "gk": jnp.ones((1, C), jnp.float32),
        "btk": jnp.zeros((1, C), jnp.float32),
        "wv1": jax.random.uniform(keys[4], (d_in, Ch), jnp.float32, -scale, scale),
        "bv1": jax.random.uniform(keys[5], (1, Ch), jnp.float32, -scale, scale),
        "gv1": jnp.ones((1, Ch), jnp.float32),
        "btv1": jnp.zeros((1, Ch), jnp.float32),
        "wv2": jax.random.uniform(keys[6], (d_in, Ch), jnp.float32, -scale, scale),
        "bv2": jax.random.uniform(keys[7], (1, Ch), jnp.float32, -scale, scale),
        "gv2": jnp.ones((1, Ch), jnp.float32),
        "btv2": jnp.zeros((1, Ch), jnp.float32),
    }


if __name__ == "__main__":
    B, N, D = 2, 8, 1024   # D=1024 is fixed by the module (nn.Linear(1024, ...))
    in_channels = 32

    key = jax.random.PRNGKey(0)
    k_sgm, k_velo, k_par = jax.random.split(key, 3)
    sgm = jax.random.normal(k_sgm, (B, N, D), jnp.float32)
    velo = jax.random.normal(k_velo, (B, N, D), jnp.float32)
    params = init_params(k_par, in_channels, D)

    out = attention_module_relu(sgm, velo, params)
    out = jax.block_until_ready(out)

    ref = reference_jax(sgm, velo, params)
    assert out.shape == (B, N, in_channels), out.shape
    # Tolerance loosened slightly vs before because the softmax denominator now
    # uses the EUP approximate reciprocal (error ~1e-4 relative, row sums >= 1).
    assert jnp.allclose(out, ref, atol=2e-3, rtol=2e-3), "mismatch vs JAX reference"

    print("KERNEL_OK")
</pallas_src>

<mosaic_0001>
module attributes {stable_mosaic.version = 11 : i64} {
  func.func @attention_kernel(%arg0: i32, %arg1: memref<2x8x1024xf32, #tpu.memory_space<vmem>>, %arg2: memref<2x8x1024xf32, #tpu.memory_space<vmem>>, %arg3: memref<1024x128xf32, #tpu.memory_space<vmem>>, %arg4: memref<3x128xf32, #tpu.memory_space<vmem>>, %arg5: memref<1024x128xf32, #tpu.memory_space<vmem>>, %arg6: memref<3x128xf32, #tpu.memory_space<vmem>>, %arg7: memref<2x8x32xf32, #tpu.memory_space<vmem>>) attributes {dimension_semantics = [#tpu.dimension_semantics<parallel>], iteration_bounds = array<i64: 1>, scalar_prefetch = 0 : i64, scratch_operands = 0 : i64, tpu.core_type = #tpu.core_type<tc>, window_params = [{transform_indices = @transform_0, window_bounds = array<i64: 2, 8, 1024>}, {transform_indices = @transform_1, window_bounds = array<i64: 2, 8, 1024>}, {pipeline_mode = #tpu.pipeline_mode<synchronous>, transform_indices = @transform_2, window_bounds = array<i64: 1024, 128>}, {pipeline_mode = #tpu.pipeline_mode<synchronous>, transform_indices = @transform_3, window_bounds = array<i64: 3, 128>}, {pipeline_mode = #tpu.pipeline_mode<synchronous>, transform_indices = @transform_4, window_bounds = array<i64: 1024, 128>}, {pipeline_mode = #tpu.pipeline_mode<synchronous>, transform_indices = @transform_5, window_bounds = array<i64: 3, 128>}, {transform_indices = @transform_6, window_bounds = array<i64: 2, 8, 32>}]} {
    %c0 = arith.constant 0 : index
    %c0_0 = arith.constant 0 : index
    %c0_1 = arith.constant 0 : index
    %0 = vector.load %arg1[%c0, %c0_0, %c0_1] : memref<2x8x1024xf32, #tpu.memory_space<vmem>>, vector<2x8x1024xf32>
    %1 = vector.shape_cast %0 : vector<2x8x1024xf32> to vector<16x1024xf32>
    %c0_2 = arith.constant 0 : index
    %c0_3 = arith.constant 0 : index
    %c0_4 = arith.constant 0 : index
    %2 = vector.load %arg2[%c0_2, %c0_3, %c0_4] : memref<2x8x1024xf32, #tpu.memory_space<vmem>>, vector<2x8x1024xf32>
    %3 = vector.shape_cast %2 : vector<2x8x1024xf32> to vector<16x1024xf32>
    %c0_5 = arith.constant 0 : index
    %c0_6 = arith.constant 0 : index
    %4 = vector.load %arg4[%c0_5, %c0_6] : memref<3x128xf32, #tpu.memory_space<vmem>>, vector<3x128xf32>
    %c0_7 = arith.constant 0 : index
    %c0_8 = arith.constant 0 : index
    %5 = vector.load %arg6[%c0_7, %c0_8] : memref<3x128xf32, #tpu.memory_space<vmem>>, vector<3x128xf32>
    %c0_9 = arith.constant 0 : index
    %c0_10 = arith.constant 0 : index
    %6 = vector.load %arg3[%c0_9, %c0_10] : memref<1024x128xf32, #tpu.memory_space<vmem>>, vector<1024x128xf32>
    %cst = arith.constant dense<0.000000e+00> : vector<16x128xf32>
    %7 = tpu.matmul %1, %6, %cst {dimension_numbers = #tpu.dot_dimension_numbers<[1], [0], [0], [1], [0, 0, 1, 1], [], []>} : vector<16x1024xf32>, vector<1024x128xf32>, vector<16x128xf32> -> vector<16x128xf32>
    %8 = vector.extract_strided_slice %4 {offsets = [0, 0], sizes = [1, 128], strides = [1, 1]} : vector<3x128xf32> to vector<1x128xf32>
    %9 = vector.broadcast %8 : vector<1x128xf32> to vector<16x128xf32>
    %10 = arith.addf %7, %9 : vector<16x128xf32>
    %c0_11 = arith.constant 0 : index
    %c0_12 = arith.constant 0 : index
    %11 = vector.load %arg5[%c0_11, %c0_12] : memref<1024x128xf32, #tpu.memory_space<vmem>>, vector<1024x128xf32>
    %cst_13 = arith.constant dense<0.000000e+00> : vector<16x128xf32>
    %12 = tpu.matmul %3, %11, %cst_13 {dimension_numbers = #tpu.dot_dimension_numbers<[1], [0], [0], [1], [0, 0, 1, 1], [], []>} : vector<16x1024xf32>, vector<1024x128xf32>, vector<16x128xf32> -> vector<16x128xf32>
    %13 = vector.extract_strided_slice %5 {offsets = [0, 0], sizes = [1, 128], strides = [1, 1]} : vector<3x128xf32> to vector<1x128xf32>
    %14 = vector.broadcast %13 : vector<1x128xf32> to vector<16x128xf32>
    %15 = arith.addf %12, %14 : vector<16x128xf32>
    %16 = vector.extract_strided_slice %10 {offsets = [0, 0], sizes = [16, 32], strides = [1, 1]} : vector<16x128xf32> to vector<16x32xf32>
    %17 = vector.extract_strided_slice %4 {offsets = [1, 0], sizes = [1, 32], strides = [1, 1]} : vector<3x128xf32> to vector<1x32xf32>
    %18 = vector.extract_strided_slice %4 {offsets = [2, 0], sizes = [1, 32], strides = [1, 1]} : vector<3x128xf32> to vector<1x32xf32>
    %cst_14 = arith.constant dense<0.000000e+00> : vector<16xf32>
    %19 = vector.multi_reduction <add>, %16, %cst_14 [1] : vector<16x32xf32> to vector<16xf32>
    %20 = vector.shape_cast %19 : vector<16xf32> to vector<16x1xf32>
    %cst_15 = arith.constant 3.200000e+01 : f32
    %21 = vector.broadcast %cst_15 : f32 to vector<16x1xf32>
    %22 = arith.divf %20, %21 : vector<16x1xf32>
    %23 = vector.broadcast %22 : vector<16x1xf32> to vector<16x32xf32>
    %24 = arith.subf %16, %23 : vector<16x32xf32>
    %25 = arith.mulf %24, %24 : vector<16x32xf32>
    %cst_16 = arith.constant dense<0.000000e+00> : vector<16xf32>
    %26 = vector.multi_reduction <add>, %25, %cst_16 [1] : vector<16x32xf32> to vector<16xf32>
    %27 = vector.shape_cast %26 : vector<16xf32> to vector<16x1xf32>
    %cst_17 = arith.constant 3.200000e+01 : f32
    %28 = vector.broadcast %cst_17 : f32 to vector<16x1xf32>
    %29 = arith.divf %27, %28 : vector<16x1xf32>
    %30 = vector.broadcast %22 : vector<16x1xf32> to vector<16x32xf32>
    %31 = arith.subf %16, %30 : vector<16x32xf32>
    %cst_18 = arith.constant 9.99999974E-6 : f32
    %32 = vector.broadcast %cst_18 : f32 to vector<16x1xf32>
    %33 = arith.addf %29, %32 : vector<16x1xf32>
    %34 = math.rsqrt %33 : vector<16x1xf32>
    %35 = vector.broadcast %34 : vector<16x1xf32> to vector<16x32xf32>
    %36 = arith.mulf %31, %35 : vector<16x32xf32>
    %37 = vector.broadcast %17 : vector<1x32xf32> to vector<16x32xf32>
    %38 = arith.mulf %36, %37 : vector<16x32xf32>
    %39 = vector.broadcast %18 : vector<1x32xf32> to vector<16x32xf32>
    %40 = arith.addf %38, %39 : vector<16x32xf32>
    %cst_19 = arith.constant 0.000000e+00 : f32
    %41 = vector.broadcast %cst_19 : f32 to vector<16x32xf32>
    %42 = arith.maximumf %40, %41 : vector<16x32xf32>
    %43 = vector.extract_strided_slice %10 {offsets = [0, 32], sizes = [16, 16], strides = [1, 1]} : vector<16x128xf32> to vector<16x16xf32>
    %44 = vector.extract_strided_slice %4 {offsets = [1, 32], sizes = [1, 16], strides = [1, 1]} : vector<3x128xf32> to vector<1x16xf32>
    %45 = vector.extract_strided_slice %4 {offsets = [2, 32], sizes = [1, 16], strides = [1, 1]} : vector<3x128xf32> to vector<1x16xf32>
    %cst_20 = arith.constant dense<0.000000e+00> : vector<16xf32>
    %46 = vector.multi_reduction <add>, %43, %cst_20 [1] : vector<16x16xf32> to vector<16xf32>
    %47 = vector.shape_cast %46 : vector<16xf32> to vector<16x1xf32>
    %cst_21 = arith.constant 1.600000e+01 : f32
    %48 = vector.broadcast %cst_21 : f32 to vector<16x1xf32>
    %49 = arith.divf %47, %48 : vector<16x1xf32>
    %50 = vector.broadcast %49 : vector<16x1xf32> to vector<16x16xf32>
    %51 = arith.subf %43, %50 : vector<16x16xf32>
    %52 = arith.mulf %51, %51 : vector<16x16xf32>
    %cst_22 = arith.constant dense<0.000000e+00> : vector<16xf32>
    %53 = vector.multi_reduction <add>, %52, %cst_22 [1] : vector<16x16xf32> to vector<16xf32>
    %54 = vector.shape_cast %53 : vector<16xf32> to vector<16x1xf32>
    %cst_23 = arith.constant 1.600000e+01 : f32
    %55 = vector.broadcast %cst_23 : f32 to vector<16x1xf32>
    %56 = arith.divf %54, %55 : vector<16x1xf32>
    %57 = vector.broadcast %49 : vector<16x1xf32> to vector<16x16xf32>
    %58 = arith.subf %43, %57 : vector<16x16xf32>
    %cst_24 = arith.constant 9.99999974E-6 : f32
    %59 = vector.broadcast %cst_24 : f32 to vector<16x1xf32>
    %60 = arith.addf %56, %59 : vector<16x1xf32>
    %61 = math.rsqrt %60 : vector<16x1xf32>
    %62 = vector.broadcast %61 : vector<16x1xf32> to vector<16x16xf32>
    %63 = arith.mulf %58, %62 : vector<16x16xf32>
    %64 = vector.broadcast %44 : vector<1x16xf32> to vector<16x16xf32>
    %65 = arith.mulf %63, %64 : vector<16x16xf32>
    %66 = vector.broadcast %45 : vector<1x16xf32> to vector<16x16xf32>
    %67 = arith.addf %65, %66 : vector<16x16xf32>
    %cst_25 = arith.constant 0.000000e+00 : f32
    %68 = vector.broadcast %cst_25 : f32 to vector<16x16xf32>
    %69 = arith.maximumf %67, %68 : vector<16x16xf32>
    %70 = vector.extract_strided_slice %15 {offsets = [0, 0], sizes = [16, 32], strides = [1, 1]} : vector<16x128xf32> to vector<16x32xf32>
    %71 = vector.extract_strided_slice %5 {offsets = [1, 0], sizes = [1, 32], strides = [1, 1]} : vector<3x128xf32> to vector<1x32xf32>
    %72 = vector.extract_strided_slice %5 {offsets = [2, 0], sizes = [1, 32], strides = [1, 1]} : vector<3x128xf32> to vector<1x32xf32>
    %cst_26 = arith.constant dense<0.000000e+00> : vector<16xf32>
    %73 = vector.multi_reduction <add>, %70, %cst_26 [1] : vector<16x32xf32> to vector<16xf32>
    %74 = vector.shape_cast %73 : vector<16xf32> to vector<16x1xf32>
    %cst_27 = arith.constant 3.200000e+01 : f32
    %75 = vector.broadcast %cst_27 : f32 to vector<16x1xf32>
    %76 = arith.divf %74, %75 : vector<16x1xf32>
    %77 = vector.broadcast %76 : vector<16x1xf32> to vector<16x32xf32>
    %78 = arith.subf %70, %77 : vector<16x32xf32>
    %79 = arith.mulf %78, %78 : vector<16x32xf32>
    %cst_28 = arith.constant dense<0.000000e+00> : vector<16xf32>
    %80 = vector.multi_reduction <add>, %79, %cst_28 [1] : vector<16x32xf32> to vector<16xf32>
    %81 = vector.shape_cast %80 : vector<16xf32> to vector<16x1xf32>
    %cst_29 = arith.constant 3.200000e+01 : f32
    %82 = vector.broadcast %cst_29 : f32 to vector<16x1xf32>
    %83 = arith.divf %81, %82 : vector<16x1xf32>
    %84 = vector.broadcast %76 : vector<16x1xf32> to vector<16x32xf32>
    %85 = arith.subf %70, %84 : vector<16x32xf32>
    %cst_30 = arith.constant 9.99999974E-6 : f32
    %86 = vector.broadcast %cst_30 : f32 to vector<16x1xf32>
    %87 = arith.addf %83, %86 : vector<16x1xf32>
    %88 = math.rsqrt %87 : vector<16x1xf32>
    %89 = vector.broadcast %88 : vector<16x1xf32> to vector<16x32xf32>
    %90 = arith.mulf %85, %89 : vector<16x32xf32>
    %91 = vector.broadcast %71 : vector<1x32xf32> to vector<16x32xf32>
    %92 = arith.mulf %90, %91 : vector<16x32xf32>
    %93 = vector.broadcast %72 : vector<1x32xf32> to vector<16x32xf32>
    %94 = arith.addf %92, %93 : vector<16x32xf32>
    %cst_31 = arith.constant 0.000000e+00 : f32
    %95 = vector.broadcast %cst_31 : f32 to vector<16x32xf32>
    %96 = arith.maximumf %94, %95 : vector<16x32xf32>
    %97 = vector.extract_strided_slice %15 {offsets = [0, 32], sizes = [16, 16], strides = [1, 1]} : vector<16x128xf32> to vector<16x16xf32>
    %98 = vector.extract_strided_slice %5 {offsets = [1, 32], sizes = [1, 16], strides = [1, 1]} : vector<3x128xf32> to vector<1x16xf32>
    %99 = vector.extract_strided_slice %5 {offsets = [2, 32], sizes = [1, 16], strides = [1, 1]} : vector<3x128xf32> to vector<1x16xf32>
    %cst_32 = arith.constant dense<0.000000e+00> : vector<16xf32>
    %100 = vector.multi_reduction <add>, %97, %cst_32 [1] : vector<16x16xf32> to vector<16xf32>
    %101 = vector.shape_cast %100 : vector<16xf32> to vector<16x1xf32>
    %cst_33 = arith.constant 1.600000e+01 : f32
    %102 = vector.broadcast %cst_33 : f32 to vector<16x1xf32>
    %103 = arith.divf %101, %102 : vector<16x1xf32>
    %104 = vector.broadcast %103 : vector<16x1xf32> to vector<16x16xf32>
    %105 = arith.subf %97, %104 : vector<16x16xf32>
    %106 = arith.mulf %105, %105 : vector<16x16xf32>
    %cst_34 = arith.constant dense<0.000000e+00> : vector<16xf32>
    %107 = vector.multi_reduction <add>, %106, %cst_34 [1] : vector<16x16xf32> to vector<16xf32>
    %108 = vector.shape_cast %107 : vector<16xf32> to vector<16x1xf32>
    %cst_35 = arith.constant 1.600000e+01 : f32
    %109 = vector.broadcast %cst_35 : f32 to vector<16x1xf32>
    %110 = arith.divf %108, %109 : vector<16x1xf32>
    %111 = vector.broadcast %103 : vector<16x1xf32> to vector<16x16xf32>
    %112 = arith.subf %97, %111 : vector<16x16xf32>
    %cst_36 = arith.constant 9.99999974E-6 : f32
    %113 = vector.broadcast %cst_36 : f32 to vector<16x1xf32>
    %114 = arith.addf %110, %113 : vector<16x1xf32>
    %115 = math.rsqrt %114 : vector<16x1xf32>
    %116 = vector.broadcast %115 : vector<16x1xf32> to vector<16x16xf32>
    %117 = arith.mulf %112, %116 : vector<16x16xf32>
    %118 = vector.broadcast %98 : vector<1x16xf32> to vector<16x16xf32>
    %119 = arith.mulf %117, %118 : vector<16x16xf32>
    %120 = vector.broadcast %99 : vector<1x16xf32> to vector<16x16xf32>
    %121 = arith.addf %119, %120 : vector<16x16xf32>
    %cst_37 = arith.constant 0.000000e+00 : f32
    %122 = vector.broadcast %cst_37 : f32 to vector<16x16xf32>
    %123 = arith.maximumf %121, %122 : vector<16x16xf32>
    %124 = vector.shape_cast %42 : vector<16x32xf32> to vector<2x8x32xf32>
    %125 = vector.shape_cast %96 : vector<16x32xf32> to vector<2x8x32xf32>
    %126 = vector.shape_cast %123 : vector<16x16xf32> to vector<2x8x16xf32>
    %127 = vector.shape_cast %69 : vector<16x16xf32> to vector<2x8x16xf32>
    "tpu.trace_start"() <{level = 10 : i32, message = "bnc,bmc->bnm"}> : () -> ()
    %cst_38 = arith.constant dense<0.000000e+00> : vector<2x8x8xf32>
    %128 = tpu.matmul %124, %125, %cst_38 {dimension_numbers = #tpu.dot_dimension_numbers<[2], [2], [1], [1], [0, 0, 0, 1, 1, 1], [0], [0]>} : vector<2x8x32xf32>, vector<2x8x32xf32>, vector<2x8x8xf32> -> vector<2x8x8xf32>
    "tpu.trace_stop"() : () -> ()
    %cst_39 = arith.constant dense<0xFF800000> : vector<2x8xf32>
    %129 = vector.multi_reduction <maximumf>, %128, %cst_39 [2] : vector<2x8x8xf32> to vector<2x8xf32>
    %130 = vector.shape_cast %129 : vector<2x8xf32> to vector<2x8x1xf32>
    %131 = vector.broadcast %130 : vector<2x8x1xf32> to vector<2x8x8xf32>
    %132 = arith.subf %128, %131 : vector<2x8x8xf32>
    %133 = math.exp %132 : vector<2x8x8xf32>
    %cst_40 = arith.constant dense<0.000000e+00> : vector<2x8xf32>
    %134 = vector.multi_reduction <add>, %133, %cst_40 [2] : vector<2x8x8xf32> to vector<2x8xf32>
    %135 = vector.shape_cast %134 : vector<2x8xf32> to vector<2x8x1xf32>
    %136 = tpu.reciprocal %135 {approx = true} : vector<2x8x1xf32> -> vector<2x8x1xf32>
    %137 = vector.broadcast %136 : vector<2x8x1xf32> to vector<2x8x8xf32>
    %138 = arith.mulf %133, %137 : vector<2x8x8xf32>
    "tpu.trace_start"() <{level = 10 : i32, message = "bnm,bmc->bnc"}> : () -> ()
    %cst_41 = arith.constant dense<0.000000e+00> : vector<2x8x16xf32>
    %139 = tpu.matmul %138, %126, %cst_41 {dimension_numbers = #tpu.dot_dimension_numbers<[2], [1], [1], [2], [0, 0, 0, 1, 1, 2], [0], [0]>} : vector<2x8x8xf32>, vector<2x8x16xf32>, vector<2x8x16xf32> -> vector<2x8x16xf32>
    "tpu.trace_stop"() : () -> ()
    %c0_42 = arith.constant 0 : index
    %c0_43 = arith.constant 0 : index
    %c0_44 = arith.constant 0 : index
    %140 = vector.load %arg7[%c0_42, %c0_43, %c0_44] : memref<2x8x32xf32, #tpu.memory_space<vmem>>, vector<2x8x16xf32>
    tpu.vector_store %arg7[%c0_42, %c0_43, %c0_44], %127 {strides = array<i32>} : memref<2x8x32xf32, #tpu.memory_space<vmem>>, vector<2x8x16xf32>,
    %c0_45 = arith.constant 0 : index
    %c0_46 = arith.constant 0 : index
    %c16 = arith.constant 16 : index
    %141 = vector.load %arg7[%c0_45, %c0_46, %c16] : memref<2x8x32xf32, #tpu.memory_space<vmem>>, vector<2x8x16xf32>
    tpu.vector_store %arg7[%c0_45, %c0_46, %c16], %139 {strides = array<i32>} : memref<2x8x32xf32, #tpu.memory_space<vmem>>, vector<2x8x16xf32>,
    return
  }
  func.func @transform_0(%arg0: i32) -> (i32, i32, i32) {
    %c0_i32 = arith.constant 0 : i32
    %c0_i32_0 = arith.constant 0 : i32
    %c0_i32_1 = arith.constant 0 : i32
    return %arg0, %c0_i32, %c0_i32_0 : i32, i32, i32
  }
  func.func @transform_1(%arg0: i32) -> (i32, i32, i32) {
    %c0_i32 = arith.constant 0 : i32
    %c0_i32_0 = arith.constant 0 : i32
    %c0_i32_1 = arith.constant 0 : i32
    return %arg0, %c0_i32, %c0_i32_0 : i32, i32, i32
  }
  func.func @transform_2(%arg0: i32) -> (i32, i32) {
    %c0_i32 = arith.constant 0 : i32
    %c0_i32_0 = arith.constant 0 : i32
    %c0_i32_1 = arith.constant 0 : i32
    return %c0_i32, %c0_i32_0 : i32, i32
  }
  func.func @transform_3(%arg0: i32) -> (i32, i32) {
    %c0_i32 = arith.constant 0 : i32
    %c0_i32_0 = arith.constant 0 : i32
    %c0_i32_1 = arith.constant 0 : i32
    return %c0_i32, %c0_i32_0 : i32, i32
  }
  func.func @transform_4(%arg0: i32) -> (i32, i32) {
    %c0_i32 = arith.constant 0 : i32
    %c0_i32_0 = arith.constant 0 : i32
    %c0_i32_1 = arith.constant 0 : i32
    return %c0_i32, %c0_i32_0 : i32, i32
  }
  func.func @transform_5(%arg0: i32) -> (i32, i32) {
    %c0_i32 = arith.constant 0 : i32
    %c0_i32_0 = arith.constant 0 : i32
    %c0_i32_1 = arith.constant 0 : i32
    return %c0_i32, %c0_i32_0 : i32, i32
  }
  func.func @transform_6(%arg0: i32) -> (i32, i32, i32) {
    %c0_i32 = arith.constant 0 : i32
    %c0_i32_0 = arith.constant 0 : i32
    %c0_i32_1 = arith.constant 0 : i32
    return %arg0, %c0_i32, %c0_i32_0 : i32, i32, i32
  }
}

</mosaic_0001>

<llo_original>
// kernel: tpu_custom_call.1
$region0: #{tpu_custom_call.1}
  #allocation0 [shape = 'u32[]', space=smem, size = 0x4, offset = 0x4, fixed_abs, tag = 'smem constant byte address 0x4 - core index']
  #allocation1 [shape = 'u32[144,128]{1,0:T(1,128)}', space=vmem, size = 0x12000, scoped, tag = 'internal scratch']
  %s0 = inlined_call_operand.hbm [shape: f32[2,8,1024], index: 0, kind: input, shape index: {}]
  %s1 = inlined_call_operand.hbm [shape: f32[2,8,1024], index: 1, kind: input, shape index: {}]
  %s2 = inlined_call_operand.hbm [shape: f32[1024,128], index: 2, kind: input, shape index: {}]
  %s3 = inlined_call_operand.vmem [shape: f32[3,128], index: 3, kind: input, shape index: {}]
  %s4 = inlined_call_operand.hbm [shape: f32[1024,128], index: 4, kind: input, shape index: {}]
  %s5 = inlined_call_operand.vmem [shape: f32[3,128], index: 5, kind: input, shape index: {}]
  %s6 = inlined_call_operand.hbm [shape: f32[2,8,32], index: 6, kind: output, shape index: {}]
  %s7 = sld [smem:[#allocation0]]
  $region50: #{tpu_custom_call.1} parent=0
    _
  %s9 = ssub.s32 1, %s7
  %s10 = scalar_select 0, %s9, %s7
  $region1: #{tpu_custom_call.1} parent=0
    #allocation2 [shape = 'u8[65536]{0}', space=vmem, size = 0x10000, scoped, tag = 'input window, operand 0, single buffered']
    #allocation3 [shape = 's32[1]{0}', space=sflag, size = 0x4, scoped, tag = 'scoped memory for tpu_custom_call.1']
    #allocation4 [shape = 's32[1]{0}', space=sflag, size = 0x4, scoped, tag = 'scoped memory for tpu_custom_call.1']
    #allocation5 [shape = 'u8[65536]{0}', space=vmem, size = 0x10000, scoped, tag = 'input window, operand 1, single buffered']
    #allocation6 [shape = 's32[1]{0}', space=sflag, size = 0x4, scoped, tag = 'scoped memory for tpu_custom_call.1']
    #allocation7 [shape = 'u8[524288]{0}', space=vmem, size = 0x80000, scoped, tag = 'input window, operand 2, single buffered']
    #allocation8 [shape = 'u8[524288]{0}', space=vmem, size = 0x80000, scoped, tag = 'input window, operand 4, single buffered']
    #allocation9 [shape = 's32[1]{0}', space=sflag, size = 0x4, scoped, tag = 'scoped memory for tpu_custom_call.1']
    #allocation10 [shape = 'u8[8192]{0}', space=vmem, size = 0x2000, scoped, tag = 'output window, operand 0, single buffered']
    %11 = vsyncpa [#allocation3], 0
    %12 = vsyncpa [#allocation6], 0
    %13 = vsyncpa [#allocation9], 0
    %14 = vsyncpa [#allocation4], 0
    // Predicated region
    $region2: #{tpu_custom_call.1} parent=1 // pred_check
      _
    $region3: #{tpu_custom_call.1} parent=1 // pred_check_branch
      %16 = sbr.rel (0) target = $region5
    $region4: #{tpu_custom_call.1} parent=1 // pred_region
      %s18 = ssub.s32 2048, 2048
      %19 = vsyncadd [#allocation3], %s18
      %s20 = sshll.u32 [#allocation2], 4
      %s21 = int_to_ptr.vmem [resolvable:$true] %s20
      %26 = dma.hbm_to_vmem [thread:$0]  %s0, 2048, %s21, [#allocation3], 1024, 1024, 64
    $region5: #{tpu_custom_call.1} parent=1 // pred_fallthru
      _
    // Predicated region
    $region6: #{tpu_custom_call.1} parent=1 // pred_check
      _
    $region7: #{tpu_custom_call.1} parent=1 // pred_check_branch
      %28 = sbr.rel (0) target = $region9
    $region8: #{tpu_custom_call.1} parent=1 // pred_region
      %s30 = ssub.s32 2048, 2048
      %31 = vsyncadd [#allocation6], %s30
      %s32 = sshll.u32 [#allocation5], 4
      %s33 = int_to_ptr.vmem [resolvable:$true] %s32
      %38 = dma.hbm_to_vmem [thread:$0]  %s1, 2048, %s33, [#allocation6], 1024, 1024, 64
    $region9: #{tpu_custom_call.1} parent=1 // pred_fallthru
      _
    // Predicated region
    $region10: #{tpu_custom_call.1} parent=1 // pred_check
      _
    $region11: #{tpu_custom_call.1} parent=1 // pred_check_branch
      %40 = sbr.rel (0) target = $region13
    $region12: #{tpu_custom_call.1} parent=1 // pred_region
      %s42 = ssub.s32 16384, 16384
      %43 = vsyncadd [#allocation6], %s42
      %s44 = sshll.u32 [#allocation7], 4
      %s45 = int_to_ptr.vmem [resolvable:$true] %s44
      %50 = dma.hbm_to_vmem [thread:$0]  %s2, 16384, %s45, [#allocation6], 128, 128, 8
    $region13: #{tpu_custom_call.1} parent=1 // pred_fallthru
      _
    // Predicated region
    $region14: #{tpu_custom_call.1} parent=1 // pred_check
      _
    $region15: #{tpu_custom_call.1} parent=1 // pred_check_branch
      %52 = sbr.rel (0) target = $region17
    $region16: #{tpu_custom_call.1} parent=1 // pred_region
      _
    $region17: #{tpu_custom_call.1} parent=1 // pred_fallthru
      _
    // Predicated region
    $region18: #{tpu_custom_call.1} parent=1 // pred_check
      _
    $region19: #{tpu_custom_call.1} parent=1 // pred_check_branch
      %54 = sbr.rel (0) target = $region21
    $region20: #{tpu_custom_call.1} parent=1 // pred_region
      %s56 = ssub.s32 16384, 16384
      %57 = vsyncadd [#allocation9], %s56
      %s58 = sshll.u32 [#allocation8], 4
      %s59 = int_to_ptr.vmem [resolvable:$true] %s58
      %64 = dma.hbm_to_vmem [thread:$0]  %s4, 16384, %s59, [#allocation9], 128, 128, 8
    $region21: #{tpu_custom_call.1} parent=1 // pred_fallthru
      _
    // Predicated region
    $region22: #{tpu_custom_call.1} parent=1 // pred_check
      _
    $region23: #{tpu_custom_call.1} parent=1 // pred_check_branch
      %66 = sbr.rel (0) target = $region25
    $region24: #{tpu_custom_call.1} parent=1 // pred_region
      _
    $region25: #{tpu_custom_call.1} parent=1 // pred_fallthru
      _
    // Predicated region
    $region26: #{tpu_custom_call.1} parent=1 // pred_check
      _
    $region27: #{tpu_custom_call.1} parent=1 // pred_check_branch
      %68 = sbr.rel (0) target = $region29
    $region28: #{tpu_custom_call.1} parent=1 // pred_region
      %69 = dma.done [#allocation3], 2048
    $region29: #{tpu_custom_call.1} parent=1 // pred_fallthru
      _
    // Predicated region
    $region30: #{tpu_custom_call.1} parent=1 // pred_check
      _
    $region31: #{tpu_custom_call.1} parent=1 // pred_check_branch
      %71 = sbr.rel (0) target = $region33
    $region32: #{tpu_custom_call.1} parent=1 // pred_region
      %72 = dma.done [#allocation6], 2048
    $region33: #{tpu_custom_call.1} parent=1 // pred_fallthru
      _
    // Predicated region
    $region34: #{tpu_custom_call.1} parent=1 // pred_check
      _
    $region35: #{tpu_custom_call.1} parent=1 // pred_check_branch
      %74 = sbr.rel (0) target = $region37
    $region36: #{tpu_custom_call.1} parent=1 // pred_region
      %75 = dma.done [#allocation6], 16384
    $region37: #{tpu_custom_call.1} parent=1 // pred_fallthru
      _
    // Predicated region
    $region38: #{tpu_custom_call.1} parent=1 // pred_check
      _
    $region39: #{tpu_custom_call.1} parent=1 // pred_check_branch
      %77 = sbr.rel (0) target = $region41
    $region40: #{tpu_custom_call.1} parent=1 // pred_region
      %78 = dma.done [#allocation9], 16384
    $region41: #{tpu_custom_call.1} parent=1 // pred_fallthru
      _
    %v79 = vld [vmem:[#allocation2] sm:$0xff]
    %v80 = vld [vmem:[#allocation2 + $0x8] sm:$0xff]
    %v81 = vld [vmem:[#allocation2 + $0x10] sm:$0xff]
    %v82 = vld [vmem:[#allocation2 + $0x18] sm:$0xff]
    %v83 = vld [vmem:[#allocation2 + $0x20] sm:$0xff]
    %v84 = vld [vmem:[#allocation2 + $0x28] sm:$0xff]
    %v85 = vld [vmem:[#allocation2 + $0x30] sm:$0xff]
    %v86 = vld [vmem:[#allocation2 + $0x38] sm:$0xff]
    %v87 = vld [vmem:[#allocation2 + $0x40] sm:$0xff]
    %v88 = vld [vmem:[#allocation2 + $0x48] sm:$0xff]
    %v89 = vld [vmem:[#allocation2 + $0x50] sm:$0xff]
    %v90 = vld [vmem:[#allocation2 + $0x58] sm:$0xff]
    %v91 = vld [vmem:[#allocation2 + $0x60] sm:$0xff]
    %v92 = vld [vmem:[#allocation2 + $0x68] sm:$0xff]
    %v93 = vld [vmem:[#allocation2 + $0x70] sm:$0xff]
    %v94 = vld [vmem:[#allocation2 + $0x78] sm:$0xff]
    %v95 = vld [vmem:[#allocation5] sm:$0xff]
    %v96 = vld [vmem:[#allocation5 + $0x8] sm:$0xff]
    %v97 = vld [vmem:[#allocation5 + $0x10] sm:$0xff]
    %v98 = vld [vmem:[#allocation5 + $0x18] sm:$0xff]
    %v99 = vld [vmem:[#allocation5 + $0x20] sm:$0xff]
    %v100 = vld [vmem:[#allocation5 + $0x28] sm:$0xff]
    %v101 = vld [vmem:[#allocation5 + $0x30] sm:$0xff]
    %v102 = vld [vmem:[#allocation5 + $0x38] sm:$0xff]
    %v103 = vld [vmem:[#allocation5 + $0x40] sm:$0xff]
    %v104 = vld [vmem:[#allocation5 + $0x48] sm:$0xff]
    %v105 = vld [vmem:[#allocation5 + $0x50] sm:$0xff]
    %v106 = vld [vmem:[#allocation5 + $0x58] sm:$0xff]
    %v107 = vld [vmem:[#allocation5 + $0x60] sm:$0xff]
    %v108 = vld [vmem:[#allocation5 + $0x68] sm:$0xff]
    %v109 = vld [vmem:[#allocation5 + $0x70] sm:$0xff]
    %v110 = vld [vmem:[#allocation5 + $0x78] sm:$0xff]
    %v111 = vld [vmem:[%s3] sm:$0x7]
    %v112 = vld [vmem:[%s5] sm:$0x7]
    %v113 = vld [vmem:[#allocation7] sm:$0xff]
    %v114 = vld [vmem:[#allocation7 + $0x8] sm:$0xff]
    %v115 = vld [vmem:[#allocation7 + $0x10] sm:$0xff]
    %v116 = vld [vmem:[#allocation7 + $0x18] sm:$0xff]
    %v117 = vld [vmem:[#allocation7 + $0x20] sm:$0xff]
    %v118 = vld [vmem:[#allocation7 + $0x28] sm:$0xff]
    %v119 = vld [vmem:[#allocation7 + $0x30] sm:$0xff]
    %v120 = vld [vmem:[#allocation7 + $0x38] sm:$0xff]
    %v121 = vld [vmem:[#allocation7 + $0x40] sm:$0xff]
    %v122 = vld [vmem:[#allocation7 + $0x48] sm:$0xff]
    %v123 = vld [vmem:[#allocation7 + $0x50] sm:$0xff]
    %v124 = vld [vmem:[#allocation7 + $0x58] sm:$0xff]
    %v125 = vld [vmem:[#allocation7 + $0x60] sm:$0xff]
    %v126 = vld [vmem:[#allocation7 + $0x68] sm:$0xff]
    %v127 = vld [vmem:[#allocation7 + $0x70] sm:$0xff]
    %v128 = vld [vmem:[#allocation7 + $0x78] sm:$0xff]
    %v129 = vld [vmem:[#allocation7 + $0x80] sm:$0xff]
    %v130 = vld [vmem:[#allocation7 + $0x88] sm:$0xff]
    %v131 = vld [vmem:[#allocation7 + $0x90] sm:$0xff]
    %v132 = vld [vmem:[#allocation7 + $0x98] sm:$0xff]
    %v133 = vld [vmem:[#allocation7 + $0xa0] sm:$0xff]
    %v134 = vld [vmem:[#allocation7 + $0xa8] sm:$0xff]
    %v135 = vld [vmem:[#allocation7 + $0xb0] sm:$0xff]
    %v136 = vld [vmem:[#allocation7 + $0xb8] sm:$0xff]
    %v137 = vld [vmem:[#allocation7 + $0xc0] sm:$0xff]
    %v138 = vld [vmem:[#allocation7 + $0xc8] sm:$0xff]
    %v139 = vld [vmem:[#allocation7 + $0xd0] sm:$0xff]
    %v140 = vld [vmem:[#allocation7 + $0xd8] sm:$0xff]
    %v141 = vld [vmem:[#allocation7 + $0xe0] sm:$0xff]
    %v142 = vld [vmem:[#allocation7 + $0xe8] sm:$0xff]
    %v143 = vld [vmem:[#allocation7 + $0xf0] sm:$0xff]
    %v144 = vld [vmem:[#allocation7 + $0xf8] sm:$0xff]
    %v145 = vld [vmem:[#allocation7 + $0x100] sm:$0xff]
    %v146 = vld [vmem:[#allocation7 + $0x108] sm:$0xff]
    %v147 = vld [vmem:[#allocation7 + $0x110] sm:$0xff]
    %v148 = vld [vmem:[#allocation7 + $0x118] sm:$0xff]
    %v149 = vld [vmem:[#allocation7 + $0x120] sm:$0xff]
    %v150 = vld [vmem:[#allocation7 + $0x128] sm:$0xff]
    %v151 = vld [vmem:[#allocation7 + $0x130] sm:$0xff]
    %v152 = vld [vmem:[#allocation7 + $0x138] sm:$0xff]
    %v153 = vld [vmem:[#allocation7 + $0x140] sm:$0xff]
    %v154 = vld [vmem:[#allocation7 + $0x148] sm:$0xff]
    %v155 = vld [vmem:[#allocation7 + $0x150] sm:$0xff]
    %v156 = vld [vmem:[#allocation7 + $0x158] sm:$0xff]
    %v157 = vld [vmem:[#allocation7 + $0x160] sm:$0xff]
    %v158 = vld [vmem:[#allocation7 + $0x168] sm:$0xff]
    %v159 = vld [vmem:[#allocation7 + $0x170] sm:$0xff]
    %v160 = vld [vmem:[#allocation7 + $0x178] sm:$0xff]
    %v161 = vld [vmem:[#allocation7 + $0x180] sm:$0xff]
    %v162 = vld [vmem:[#allocation7 + $0x188] sm:$0xff]
    %v163 = vld [vmem:[#allocation7 + $0x190] sm:$0xff]
    %v164 = vld [vmem:[#allocation7 + $0x198] sm:$0xff]
    %v165 = vld [vmem:[#allocation7 + $0x1a0] sm:$0xff]
    %v166 = vld [vmem:[#allocation7 + $0x1a8] sm:$0xff]
    %v167 = vld [vmem:[#allocation7 + $0x1b0] sm:$0xff]
    %v168 = vld [vmem:[#allocation7 + $0x1b8] sm:$0xff]
    %v169 = vld [vmem:[#allocation7 + $0x1c0] sm:$0xff]
    %v170 = vld [vmem:[#allocation7 + $0x1c8] sm:$0xff]
    %v171 = vld [vmem:[#allocation7 + $0x1d0] sm:$0xff]
    %v172 = vld [vmem:[#allocation7 + $0x1d8] sm:$0xff]
    %v173 = vld [vmem:[#allocation7 + $0x1e0] sm:$0xff]
    %v174 = vld [vmem:[#allocation7 + $0x1e8] sm:$0xff]
    %v175 = vld [vmem:[#allocation7 + $0x1f0] sm:$0xff]
    %v176 = vld [vmem:[#allocation7 + $0x1f8] sm:$0xff]
    %v177 = vld [vmem:[#allocation7 + $0x200] sm:$0xff]
    %v178 = vld [vmem:[#allocation7 + $0x208] sm:$0xff]
    %v179 = vld [vmem:[#allocation7 + $0x210] sm:$0xff]
    %v180 = vld [vmem:[#allocation7 + $0x218] sm:$0xff]
    %v181 = vld [vmem:[#allocation7 + $0x220] sm:$0xff]
    %v182 = vld [vmem:[#allocation7 + $0x228] sm:$0xff]
    %v183 = vld [vmem:[#allocation7 + $0x230] sm:$0xff]
    %v184 = vld [vmem:[#allocation7 + $0x238] sm:$0xff]
    %v185 = vld [vmem:[#allocation7 + $0x240] sm:$0xff]
    %v186 = vld [vmem:[#allocation7 + $0x248] sm:$0xff]
    %v187 = vld [vmem:[#allocation7 + $0x250] sm:$0xff]
    %v188 = vld [vmem:[#allocation7 + $0x258] sm:$0xff]
    %v189 = vld [vmem:[#allocation7 + $0x260] sm:$0xff]
    %v190 = vld [vmem:[#allocation7 + $0x268] sm:$0xff]
    %v191 = vld [vmem:[#allocation7 + $0x270] sm:$0xff]
    %v192 = vld [vmem:[#allocation7 + $0x278] sm:$0xff]
    %v193 = vld [vmem:[#allocation7 + $0x280] sm:$0xff]
    %v194 = vld [vmem:[#allocation7 + $0x288] sm:$0xff]
    %v195 = vld [vmem:[#allocation7 + $0x290] sm:$0xff]
    %v196 = vld [vmem:[#allocation7 + $0x298] sm:$0xff]
    %v197 = vld [vmem:[#allocation7 + $0x2a0] sm:$0xff]
    %v198 = vld [vmem:[#allocation7 + $0x2a8] sm:$0xff]
    %v199 = vld [vmem:[#allocation7 + $0x2b0] sm:$0xff]
    %v200 = vld [vmem:[#allocation7 + $0x2b8] sm:$0xff]
    %v201 = vld [vmem:[#allocation7 + $0x2c0] sm:$0xff]
    %v202 = vld [vmem:[#allocation7 + $0x2c8] sm:$0xff]
    %v203 = vld [vmem:[#allocation7 + $0x2d0] sm:$0xff]
    %v204 = vld [vmem:[#allocation7 + $0x2d8] sm:$0xff]
    %v205 = vld [vmem:[#allocation7 + $0x2e0] sm:$0xff]
    %v206 = vld [vmem:[#allocation7 + $0x2e8] sm:$0xff]
    %v207 = vld [vmem:[#allocation7 + $0x2f0] sm:$0xff]
    %v208 = vld [vmem:[#allocation7 + $0x2f8] sm:$0xff]
    %v209 = vld [vmem:[#allocation7 + $0x300] sm:$0xff]
    %v210 = vld [vmem:[#allocation7 + $0x308] sm:$0xff]
    %v211 = vld [vmem:[#allocation7 + $0x310] sm:$0xff]
    %v212 = vld [vmem:[#allocation7 + $0x318] sm:$0xff]
    %v213 = vld [vmem:[#allocation7 + $0x320] sm:$0xff]
    %v214 = vld [vmem:[#allocation7 + $0x328] sm:$0xff]
    %v215 = vld [vmem:[#allocation7 + $0x330] sm:$0xff]
    %v216 = vld [vmem:[#allocation7 + $0x338] sm:$0xff]
    %v217 = vld [vmem:[#allocation7 + $0x340] sm:$0xff]
    %v218 = vld [vmem:[#allocation7 + $0x348] sm:$0xff]
    %v219 = vld [vmem:[#allocation7 + $0x350] sm:$0xff]
    %v220 = vld [vmem:[#allocation7 + $0x358] sm:$0xff]
    %v221 = vld [vmem:[#allocation7 + $0x360] sm:$0xff]
    %v222 = vld [vmem:[#allocation7 + $0x368] sm:$0xff]
    %v223 = vld [vmem:[#allocation7 + $0x370] sm:$0xff]
    %v224 = vld [vmem:[#allocation7 + $0x378] sm:$0xff]
    %v225 = vld [vmem:[#allocation7 + $0x380] sm:$0xff]
    %v226 = vld [vmem:[#allocation7 + $0x388] sm:$0xff]
    %v227 = vld [vmem:[#allocation7 + $0x390] sm:$0xff]
    %v228 = vld [vmem:[#allocation7 + $0x398] sm:$0xff]
    %v229 = vld [vmem:[#allocation7 + $0x3a0] sm:$0xff]
    %v230 = vld [vmem:[#allocation7 + $0x3a8] sm:$0xff]
    %v231 = vld [vmem:[#allocation7 + $0x3b0] sm:$0xff]
    %v232 = vld [vmem:[#allocation7 + $0x3b8] sm:$0xff]
    %v233 = vld [vmem:[#allocation7 + $0x3c0] sm:$0xff]
    %v234 = vld [vmem:[#allocation7 + $0x3c8] sm:$0xff]
    %v235 = vld [vmem:[#allocation7 + $0x3d0] sm:$0xff]
    %v236 = vld [vmem:[#allocation7 + $0x3d8] sm:$0xff]
    %v237 = vld [vmem:[#allocation7 + $0x3e0] sm:$0xff]
    %v238 = vld [vmem:[#allocation7 + $0x3e8] sm:$0xff]
    %v239 = vld [vmem:[#allocation7 + $0x3f0] sm:$0xff]
    %v240 = vld [vmem:[#allocation7 + $0x3f8] sm:$0xff]
    %v241 = vlaneseq
    %v242 = vshrl.u32 %v241, 7
    %v243 = vsub.s32 0, %v242
    %v244 = vrot.slane %v111, %v243
    %245 = vmatprep.subr.mxu0 0.0
    %246 = vmatpush1.msra.mxu0 %v113
    %247 = vmatprep.subr.mxu0 0.0
    %248 = vmatpush1.msra.mxu0 %v114
    %249 = vmatprep.subr.mxu0 0.0
    %250 = vmatpush1.msra.mxu0 %v115
    %251 = vmatprep.subr.mxu0 0.0
    %252 = vmatpush1.msra.mxu0 %v116
    %253 = vmatprep.subr.mxu0 0.0
    %254 = vmatpush1.msra.mxu0 %v117
    %255 = vmatprep.subr.mxu0 0.0
    %256 = vmatpush1.msra.mxu0 %v118
    %257 = vmatprep.subr.mxu0 0.0
    %258 = vmatpush1.msra.mxu0 %v119
    %259 = vmatprep.subr.mxu0 0.0
    %260 = vmatpush1.msra.mxu0 %v120
    %261 = vmatprep.subr.mxu0 0.0
    %262 = vmatpush1.msra.mxu0 %v121
    %263 = vmatprep.subr.mxu0 0.0
    %264 = vmatpush1.msra.mxu0 %v122
    %265 = vmatprep.subr.mxu0 0.0
    %266 = vmatpush1.msra.mxu0 %v123
    %267 = vmatprep.subr.mxu0 0.0
    %268 = vmatpush1.msra.mxu0 %v124
    %269 = vmatprep.subr.mxu0 0.0
    %270 = vmatpush1.msra.mxu0 %v125
    %271 = vmatprep.subr.mxu0 0.0
    %272 = vmatpush1.msra.mxu0 %v126
    %273 = vmatprep.subr.mxu0 0.0
    %274 = vmatpush1.msra.mxu0 %v127
    %275 = vmatprep.subr.mxu0 0.0
    %276 = vmatpush1.msra.mxu0 %v128
    %277 = vmatprep.subr.mxu0 0.0
    %278 = vmatpush1.msra.mxu0 %v129
    %279 = vmatprep.subr.mxu0 0.0
    %280 = vmatpush1.msra.mxu0 %v130
    %281 = vmatprep.subr.mxu0 0.0
    %282 = vmatpush1.msra.mxu0 %v131
    %283 = vmatprep.subr.mxu0 0.0
    %284 = vmatpush1.msra.mxu0 %v132
    %285 = vmatprep.subr.mxu0 0.0
    %286 = vmatpush1.msra.mxu0 %v133
    %287 = vmatprep.subr.mxu0 0.0
    %288 = vmatpush1.msra.mxu0 %v134
    %289 = vmatprep.subr.mxu0 0.0
    %290 = vmatpush1.msra.mxu0 %v135
    %291 = vmatprep.subr.mxu0 0.0
    %292 = vmatpush1.msra.mxu0 %v136
    %293 = vmatprep.subr.mxu0 0.0
    %294 = vmatpush1.msra.mxu0 %v137
    %295 = vmatprep.subr.mxu0 0.0
    %296 = vmatpush1.msra.mxu0 %v138
    %297 = vmatprep.subr.mxu0 0.0
    %298 = vmatpush1.msra.mxu0 %v139
    %299 = vmatprep.subr.mxu0 0.0
    %300 = vmatpush1.msra.mxu0 %v140
    %301 = vmatprep.subr.mxu0 0.0
    %302 = vmatpush1.msra.mxu0 %v141
    %303 = vmatprep.subr.mxu0 0.0
    %304 = vmatpush1.msra.mxu0 %v142
    %305 = vmatprep.subr.mxu0 0.0
    %306 = vmatpush1.msra.mxu0 %v143
    %307 = vmatprep.subr.mxu0 0.0
    %308 = vmatpush1.msra.mxu0 %v144
    %309 = vmatprep.mubr.f32.mxu0 %v80
    %310 = vmatmul.mubr.f32.gmra.mrb[0].mxu0 %v79
    %v311 = vpop.f32.mrb[0].mxu0
    %v312 = vadd.f32 %v244, %v311
    %v313 = vpop.f32.mrb[0].mxu0
    %314 = vmatprep.mubr.f32.mxu0 %v88
    %315 = vmatmul.mubr.f32.gmra.mrb[0].mxu0 %v87
    %v316 = vpop.f32.mrb[0].mxu0
    %v317 = vadd.f32 %v244, %v316
    %v318 = vpop.f32.mrb[0].mxu0
    %319 = vdwg.mxu0
    %320 = vmatprep.subr.mxu0 0.0
    %321 = vmatpush1.msra.mxu0 %v145
    %322 = vmatprep.subr.mxu0 0.0
    %323 = vmatpush1.msra.mxu0 %v146
    %324 = vmatprep.subr.mxu0 0.0
    %325 = vmatpush1.msra.mxu0 %v147
    %326 = vmatprep.subr.mxu0 0.0
    %327 = vmatpush1.msra.mxu0 %v148
    %328 = vmatprep.subr.mxu0 0.0
    %329 = vmatpush1.msra.mxu0 %v149
    %330 = vmatprep.subr.mxu0 0.0
    %331 = vmatpush1.msra.mxu0 %v150
    %332 = vmatprep.subr.mxu0 0.0
    %333 = vmatpush1.msra.mxu0 %v151
    %334 = vmatprep.subr.mxu0 0.0
    %335 = vmatpush1.msra.mxu0 %v152
    %336 = vmatprep.subr.mxu0 0.0
    %337 = vmatpush1.msra.mxu0 %v153
    %338 = vmatprep.subr.mxu0 0.0
    %339 = vmatpush1.msra.mxu0 %v154
    %340 = vmatprep.subr.mxu0 0.0
    %341 = vmatpush1.msra.mxu0 %v155
    %342 = vmatprep.subr.mxu0 0.0
    %343 = vmatpush1.msra.mxu0 %v156
    %344 = vmatprep.subr.mxu0 0.0
    %345 = vmatpush1.msra.mxu0 %v157
    %346 = vmatprep.subr.mxu0 0.0
    %347 = vmatpush1.msra.mxu0 %v158
    %348 = vmatprep.subr.mxu0 0.0
    %349 = vmatpush1.msra.mxu0 %v159
    %350 = vmatprep.subr.mxu0 0.0
    %351 = vmatpush1.msra.mxu0 %v160
    %352 = vmatprep.subr.mxu0 0.0
    %353 = vmatpush1.msra.mxu0 %v161
    %354 = vmatprep.subr.mxu0 0.0
    %355 = vmatpush1.msra.mxu0 %v162
    %356 = vmatprep.subr.mxu0 0.0
    %357 = vmatpush1.msra.mxu0 %v163
    %358 = vmatprep.subr.mxu0 0.0
    %359 = vmatpush1.msra.mxu0 %v164
    %360 = vmatprep.subr.mxu0 0.0
    %361 = vmatpush1.msra.mxu0 %v165
    %362 = vmatprep.subr.mxu0 0.0
    %363 = vmatpush1.msra.mxu0 %v166
    %364 = vmatprep.subr.mxu0 0.0
    %365 = vmatpush1.msra.mxu0 %v167
    %366 = vmatprep.subr.mxu0 0.0
    %367 = vmatpush1.msra.mxu0 %v168
    %368 = vmatprep.subr.mxu0 0.0
    %369 = vmatpush1.msra.mxu0 %v169
    %370 = vmatprep.subr.mxu0 0.0
    %371 = vmatpush1.msra.mxu0 %v170
    %372 = vmatprep.subr.mxu0 0.0
    %373 = vmatpush1.msra.mxu0 %v171
    %374 = vmatprep.subr.mxu0 0.0
    %375 = vmatpush1.msra.mxu0 %v172
    %376 = vmatprep.subr.mxu0 0.0
    %377 = vmatpush1.msra.mxu0 %v173
    %378 = vmatprep.subr.mxu0 0.0
    %379 = vmatpush1.msra.mxu0 %v174
    %380 = vmatprep.subr.mxu0 0.0
    %381 = vmatpush1.msra.mxu0 %v175
    %382 = vmatprep.subr.mxu0 0.0
    %383 = vmatpush1.msra.mxu0 %v176
    %384 = vmatprep.mubr.f32.mxu0 %v82
    %385 = vmatmul.mubr.f32.gmra.mrb[0].mxu0 %v81
    %v386 = vpop.f32.mrb[0].mxu0
    %v387 = vadd.f32 %v312, %v386
    %v388 = vpop.f32.mrb[0].mxu0
    %389 = vmatprep.mubr.f32.mxu0 %v90
    %390 = vmatmul.mubr.f32.gmra.mrb[0].mxu0 %v89
    %v391 = vpop.f32.mrb[0].mxu0
    %v392 = vadd.f32 %v317, %v391
    %v393 = vpop.f32.mrb[0].mxu0
    %394 = vdwg.mxu0
    %395 = vmatprep.subr.mxu0 0.0
    %396 = vmatpush1.msra.mxu0 %v177
    %397 = vmatprep.subr.mxu0 0.0
    %398 = vmatpush1.msra.mxu0 %v178
    %399 = vmatprep.subr.mxu0 0.0
    %400 = vmatpush1.msra.mxu0 %v179
    %401 = vmatprep.subr.mxu0 0.0
    %402 = vmatpush1.msra.mxu0 %v180
    %403 = vmatprep.subr.mxu0 0.0
    %404 = vmatpush1.msra.mxu0 %v181
    %405 = vmatprep.subr.mxu0 0.0
    %406 = vmatpush1.msra.mxu0 %v182
    %407 = vmatprep.subr.mxu0 0.0
    %408 = vmatpush1.msra.mxu0 %v183
    %409 = vmatprep.subr.mxu0 0.0
    %410 = vmatpush1.msra.mxu0 %v184
    %411 = vmatprep.subr.mxu0 0.0
    %412 = vmatpush1.msra.mxu0 %v185
    %413 = vmatprep.subr.mxu0 0.0
    %414 = vmatpush1.msra.mxu0 %v186
    %415 = vmatprep.subr.mxu0 0.0
    %416 = vmatpush1.msra.mxu0 %v187
    %417 = vmatprep.subr.mxu0 0.0
    %418 = vmatpush1.msra.mxu0 %v188
    %419 = vmatprep.subr.mxu0 0.0
    %420 = vmatpush1.msra.mxu0 %v189
    %421 = vmatprep.subr.mxu0 0.0
    %422 = vmatpush1.msra.mxu0 %v190
    %423 = vmatprep.subr.mxu0 0.0
    %424 = vmatpush1.msra.mxu0 %v191
    %425 = vmatprep.subr.mxu0 0.0
    %426 = vmatpush1.msra.mxu0 %v192
    %427 = vmatprep.subr.mxu0 0.0
    %428 = vmatpush1.msra.mxu0 %v193
    %429 = vmatprep.subr.mxu0 0.0
    %430 = vmatpush1.msra.mxu0 %v194
    %431 = vmatprep.subr.mxu0 0.0
    %432 = vmatpush1.msra.mxu0 %v195
    %433 = vmatprep.subr.mxu0 0.0
    %434 = vmatpush1.msra.mxu0 %v196
    %435 = vmatprep.subr.mxu0 0.0
    %436 = vmatpush1.msra.mxu0 %v197
    %437 = vmatprep.subr.mxu0 0.0
    %438 = vmatpush1.msra.mxu0 %v198
    %439 = vmatprep.subr.mxu0 0.0
    %440 = vmatpush1.msra.mxu0 %v199
    %441 = vmatprep.subr.mxu0 0.0
    %442 = vmatpush1.msra.mxu0 %v200
    %443 = vmatprep.subr.mxu0 0.0
    %444 = vmatpush1.msra.mxu0 %v201
    %445 = vmatprep.subr.mxu0 0.0
    %446 = vmatpush1.msra.mxu0 %v202
    %447 = vmatprep.subr.mxu0 0.0
    %448 = vmatpush1.msra.mxu0 %v203
    %449 = vmatprep.subr.mxu0 0.0
    %450 = vmatpush1.msra.mxu0 %v204
    %451 = vmatprep.subr.mxu0 0.0
    %452 = vmatpush1.msra.mxu0 %v205
    %453 = vmatprep.subr.mxu0 0.0
    %454 = vmatpush1.msra.mxu0 %v206
    %455 = vmatprep.subr.mxu0 0.0
    %456 = vmatpush1.msra.mxu0 %v207
    %457 = vmatprep.subr.mxu0 0.0
    %458 = vmatpush1.msra.mxu0 %v208
    %459 = vmatprep.mubr.f32.mxu0 %v84
    %460 = vmatmul.mubr.f32.gmra.mrb[0].mxu0 %v83
    %v461 = vpop.f32.mrb[0].mxu0
    %v462 = vadd.f32 %v387, %v461
    %v463 = vpop.f32.mrb[0].mxu0
    %464 = vmatprep.mubr.f32.mxu0 %v92
    %465 = vmatmul.mubr.f32.gmra.mrb[0].mxu0 %v91
    %v466 = vpop.f32.mrb[0].mxu0
    %v467 = vadd.f32 %v392, %v466
    %v468 = vpop.f32.mrb[0].mxu0
    %469 = vdwg.mxu0
    %470 = vmatprep.subr.mxu0 0.0
    %471 = vmatpush1.msra.mxu0 %v209
    %472 = vmatprep.subr.mxu0 0.0
    %473 = vmatpush1.msra.mxu0 %v210
    %474 = vmatprep.subr.mxu0 0.0
    %475 = vmatpush1.msra.mxu0 %v211
    %476 = vmatprep.subr.mxu0 0.0
    %477 = vmatpush1.msra.mxu0 %v212
    %478 = vmatprep.subr.mxu0 0.0
    %479 = vmatpush1.msra.mxu0 %v213
    %480 = vmatprep.subr.mxu0 0.0
    %481 = vmatpush1.msra.mxu0 %v214
    %482 = vmatprep.subr.mxu0 0.0
    %483 = vmatpush1.msra.mxu0 %v215
    %484 = vmatprep.subr.mxu0 0.0
    %485 = vmatpush1.msra.mxu0 %v216
    %486 = vmatprep.subr.mxu0 0.0
    %487 = vmatpush1.msra.mxu0 %v217
    %488 = vmatprep.subr.mxu0 0.0
    %489 = vmatpush1.msra.mxu0 %v218
    %490 = vmatprep.subr.mxu0 0.0
    %491 = vmatpush1.msra.mxu0 %v219
    %492 = vmatprep.subr.mxu0 0.0
    %493 = vmatpush1.msra.mxu0 %v220
    %494 = vmatprep.subr.mxu0 0.0
    %495 = vmatpush1.msra.mxu0 %v221
    %496 = vmatprep.subr.mxu0 0.0
    %497 = vmatpush1.msra.mxu0 %v222
    %498 = vmatprep.subr.mxu0 0.0
    %499 = vmatpush1.msra.mxu0 %v223
    %500 = vmatprep.subr.mxu0 0.0
    %501 = vmatpush1.msra.mxu0 %v224
    %502 = vmatprep.subr.mxu0 0.0
    %503 = vmatpush1.msra.mxu0 %v225
    %504 = vmatprep.subr.mxu0 0.0
    %505 = vmatpush1.msra.mxu0 %v226
    %506 = vmatprep.subr.mxu0 0.0
    %507 = vmatpush1.msra.mxu0 %v227
    %508 = vmatprep.subr.mxu0 0.0
    %509 = vmatpush1.msra.mxu0 %v228
    %510 = vmatprep.subr.mxu0 0.0
    %511 = vmatpush1.msra.mxu0 %v229
    %512 = vmatprep.subr.mxu0 0.0
    %513 = vmatpush1.msra.mxu0 %v230
    %514 = vmatprep.subr.mxu0 0.0
    %515 = vmatpush1.msra.mxu0 %v231
    %516 = vmatprep.subr.mxu0 0.0
    %517 = vmatpush1.msra.mxu0 %v232
    %518 = vmatprep.subr.mxu0 0.0
    %519 = vmatpush1.msra.mxu0 %v233
    %520 = vmatprep.subr.mxu0 0.0
    %521 = vmatpush1.msra.mxu0 %v234
    %522 = vmatprep.subr.mxu0 0.0
    %523 = vmatpush1.msra.mxu0 %v235
    %524 = vmatprep.subr.mxu0 0.0
    %525 = vmatpush1.msra.mxu0 %v236
    %526 = vmatprep.subr.mxu0 0.0
    %527 = vmatpush1.msra.mxu0 %v237
    %528 = vmatprep.subr.mxu0 0.0
    %529 = vmatpush1.msra.mxu0 %v238
    %530 = vmatprep.subr.mxu0 0.0
    %531 = vmatpush1.msra.mxu0 %v239
    %532 = vmatprep.subr.mxu0 0.0
    %533 = vmatpush1.msra.mxu0 %v240
    %534 = vmatprep.mubr.f32.mxu0 %v86
    %535 = vmatmul.mubr.f32.gmra.mrb[0].mxu0 %v85
    %v536 = vpop.f32.mrb[0].mxu0
    %v537 = vadd.f32 %v462, %v536
    %v538 = vpop.f32.mrb[0].mxu0
    %539 = vmatprep.mubr.f32.mxu0 %v94
    %540 = vmatmul.mubr.f32.gmra.mrb[0].mxu0 %v93
    %v541 = vpop.f32.mrb[0].mxu0
    %v542 = vadd.f32 %v467, %v541
    %v543 = vpop.f32.mrb[0].mxu0
    %544 = vdwg.mxu0
    %v545 = vld [vmem:[#allocation8] sm:$0xff]
    %v546 = vld [vmem:[#allocation8 + $0x8] sm:$0xff]
    %v547 = vld [vmem:[#allocation8 + $0x10] sm:$0xff]
    %v548 = vld [vmem:[#allocation8 + $0x18] sm:$0xff]
    %v549 = vld [vmem:[#allocation8 + $0x20] sm:$0xff]
    %v550 = vld [vmem:[#allocation8 + $0x28] sm:$0xff]
    %v551 = vld [vmem:[#allocation8 + $0x30] sm:$0xff]
    %v552 = vld [vmem:[#allocation8 + $0x38] sm:$0xff]
    %v553 = vld [vmem:[#allocation8 + $0x40] sm:$0xff]
    %v554 = vld [vmem:[#allocation8 + $0x48] sm:$0xff]
    %v555 = vld [vmem:[#allocation8 + $0x50] sm:$0xff]
    %v556 = vld [vmem:[#allocation8 + $0x58] sm:$0xff]
    %v557 = vld [vmem:[#allocation8 + $0x60] sm:$0xff]
    %v558 = vld [vmem:[#allocation8 + $0x68] sm:$0xff]
    %v559 = vld [vmem:[#allocation8 + $0x70] sm:$0xff]
    %v560 = vld [vmem:[#allocation8 + $0x78] sm:$0xff]
    %v561 = vld [vmem:[#allocation8 + $0x80] sm:$0xff]
    %v562 = vld [vmem:[#allocation8 + $0x88] sm:$0xff]
    %v563 = vld [vmem:[#allocation8 + $0x90] sm:$0xff]
    %v564 = vld [vmem:[#allocation8 + $0x98] sm:$0xff]
    %v565 = vld [vmem:[#allocation8 + $0xa0] sm:$0xff]
    %v566 = vld [vmem:[#allocation8 + $0xa8] sm:$0xff]
    %v567 = vld [vmem:[#allocation8 + $0xb0] sm:$0xff]
    %v568 = vld [vmem:[#allocation8 + $0xb8] sm:$0xff]
    %v569 = vld [vmem:[#allocation8 + $0xc0] sm:$0xff]
    %v570 = vld [vmem:[#allocation8 + $0xc8] sm:$0xff]
    %v571 = vld [vmem:[#allocation8 + $0xd0] sm:$0xff]
    %v572 = vld [vmem:[#allocation8 + $0xd8] sm:$0xff]
    %v573 = vld [vmem:[#allocation8 + $0xe0] sm:$0xff]
    %v574 = vld [vmem:[#allocation8 + $0xe8] sm:$0xff]
    %v575 = vld [vmem:[#allocation8 + $0xf0] sm:$0xff]
    %v576 = vld [vmem:[#allocation8 + $0xf8] sm:$0xff]
    %v577 = vld [vmem:[#allocation8 + $0x100] sm:$0xff]
    %v578 = vld [vmem:[#allocation8 + $0x108] sm:$0xff]
    %v579 = vld [vmem:[#allocation8 + $0x110] sm:$0xff]
    %v580 = vld [vmem:[#allocation8 + $0x118] sm:$0xff]
    %v581 = vld [vmem:[#allocation8 + $0x120] sm:$0xff]
    %v582 = vld [vmem:[#allocation8 + $0x128] sm:$0xff]
    %v583 = vld [vmem:[#allocation8 + $0x130] sm:$0xff]
    %v584 = vld [vmem:[#allocation8 + $0x138] sm:$0xff]
    %v585 = vld [vmem:[#allocation8 + $0x140] sm:$0xff]
    %v586 = vld [vmem:[#allocation8 + $0x148] sm:$0xff]
    %v587 = vld [vmem:[#allocation8 + $0x150] sm:$0xff]
    %v588 = vld [vmem:[#allocation8 + $0x158] sm:$0xff]
    %v589 = vld [vmem:[#allocation8 + $0x160] sm:$0xff]
    %v590 = vld [vmem:[#allocation8 + $0x168] sm:$0xff]
    %v591 = vld [vmem:[#allocation8 + $0x170] sm:$0xff]
    %v592 = vld [vmem:[#allocation8 + $0x178] sm:$0xff]
    %v593 = vld [vmem:[#allocation8 + $0x180] sm:$0xff]
    %v594 = vld [vmem:[#allocation8 + $0x188] sm:$0xff]
    %v595 = vld [vmem:[#allocation8 + $0x190] sm:$0xff]
    %v596 = vld [vmem:[#allocation8 + $0x198] sm:$0xff]
    %v597 = vld [vmem:[#allocation8 + $0x1a0] sm:$0xff]
    %v598 = vld [vmem:[#allocation8 + $0x1a8] sm:$0xff]
    %v599 = vld [vmem:[#allocation8 + $0x1b0] sm:$0xff]
    %v600 = vld [vmem:[#allocation8 + $0x1b8] sm:$0xff]
    %v601 = vld [vmem:[#allocation8 + $0x1c0] sm:$0xff]
    %v602 = vld [vmem:[#allocation8 + $0x1c8] sm:$0xff]
    %v603 = vld [vmem:[#allocation8 + $0x1d0] sm:$0xff]
    %v604 = vld [vmem:[#allocation8 + $0x1d8] sm:$0xff]
    %v605 = vld [vmem:[#allocation8 + $0x1e0] sm:$0xff]
    %v606 = vld [vmem:[#allocation8 + $0x1e8] sm:$0xff]
    %v607 = vld [vmem:[#allocation8 + $0x1f0] sm:$0xff]
    %v608 = vld [vmem:[#allocation8 + $0x1f8] sm:$0xff]
    %v609 = vld [vmem:[#allocation8 + $0x200] sm:$0xff]
    %v610 = vld [vmem:[#allocation8 + $0x208] sm:$0xff]
    %v611 = vld [vmem:[#allocation8 + $0x210] sm:$0xff]
    %v612 = vld [vmem:[#allocation8 + $0x218] sm:$0xff]
    %v613 = vld [vmem:[#allocation8 + $0x220] sm:$0xff]
    %v614 = vld [vmem:[#allocation8 + $0x228] sm:$0xff]
    %v615 = vld [vmem:[#allocation8 + $0x230] sm:$0xff]
    %v616 = vld [vmem:[#allocation8 + $0x238] sm:$0xff]
    %v617 = vld [vmem:[#allocation8 + $0x240] sm:$0xff]
    %v618 = vld [vmem:[#allocation8 + $0x248] sm:$0xff]
    %v619 = vld [vmem:[#allocation8 + $0x250] sm:$0xff]
    %v620 = vld [vmem:[#allocation8 + $0x258] sm:$0xff]
    %v621 = vld [vmem:[#allocation8 + $0x260] sm:$0xff]
    %v622 = vld [vmem:[#allocation8 + $0x268] sm:$0xff]
    %v623 = vld [vmem:[#allocation8 + $0x270] sm:$0xff]
    %v624 = vld [vmem:[#allocation8 + $0x278] sm:$0xff]
    %v625 = vld [vmem:[#allocation8 + $0x280] sm:$0xff]
    %v626 = vld [vmem:[#allocation8 + $0x288] sm:$0xff]
    %v627 = vld [vmem:[#allocation8 + $0x290] sm:$0xff]
    %v628 = vld [vmem:[#allocation8 + $0x298] sm:$0xff]
    %v629 = vld [vmem:[#allocation8 + $0x2a0] sm:$0xff]
    %v630 = vld [vmem:[#allocation8 + $0x2a8] sm:$0xff]
    %v631 = vld [vmem:[#allocation8 + $0x2b0] sm:$0xff]
    %v632 = vld [vmem:[#allocation8 + $0x2b8] sm:$0xff]
    %v633 = vld [vmem:[#allocation8 + $0x2c0] sm:$0xff]
    %v634 = vld [vmem:[#allocation8 + $0x2c8] sm:$0xff]
    %v635 = vld [vmem:[#allocation8 + $0x2d0] sm:$0xff]
    %v636 = vld [vmem:[#allocation8 + $0x2d8] sm:$0xff]
    %v637 = vld [vmem:[#allocation8 + $0x2e0] sm:$0xff]
    %v638 = vld [vmem:[#allocation8 + $0x2e8] sm:$0xff]
    %v639 = vld [vmem:[#allocation8 + $0x2f0] sm:$0xff]
    %v640 = vld [vmem:[#allocation8 + $0x2f8] sm:$0xff]
    %v641 = vld [vmem:[#allocation8 + $0x300] sm:$0xff]
    %v642 = vld [vmem:[#allocation8 + $0x308] sm:$0xff]
    %v643 = vld [vmem:[#allocation8 + $0x310] sm:$0xff]
    %v644 = vld [vmem:[#allocation8 + $0x318] sm:$0xff]
    %v645 = vld [vmem:[#allocation8 + $0x320] sm:$0xff]
    %v646 = vld [vmem:[#allocation8 + $0x328] sm:$0xff]
    %v647 = vld [vmem:[#allocation8 + $0x330] sm:$0xff]
    %v648 = vld [vmem:[#allocation8 + $0x338] sm:$0xff]
    %v649 = vld [vmem:[#allocation8 + $0x340] sm:$0xff]
    %v650 = vld [vmem:[#allocation8 + $0x348] sm:$0xff]
    %v651 = vld [vmem:[#allocation8 + $0x350] sm:$0xff]
    %v652 = vld [vmem:[#allocation8 + $0x358] sm:$0xff]
    %v653 = vld [vmem:[#allocation8 + $0x360] sm:$0xff]
    %v654 = vld [vmem:[#allocation8 + $0x368] sm:$0xff]
    %v655 = vld [vmem:[#allocation8 + $0x370] sm:$0xff]
    %v656 = vld [vmem:[#allocation8 + $0x378] sm:$0xff]
    %v657 = vld [vmem:[#allocation8 + $0x380] sm:$0xff]
    %v658 = vld [vmem:[#allocation8 + $0x388] sm:$0xff]
    %v659 = vld [vmem:[#allocation8 + $0x390] sm:$0xff]
    %v660 = vld [vmem:[#allocation8 + $0x398] sm:$0xff]
    %v661 = vld [vmem:[#allocation8 + $0x3a0] sm:$0xff]
    %v662 = vld [vmem:[#allocation8 + $0x3a8] sm:$0xff]
    %v663 = vld [vmem:[#allocation8 + $0x3b0] sm:$0xff]
    %v664 = vld [vmem:[#allocation8 + $0x3b8] sm:$0xff]
    %v665 = vld [vmem:[#allocation8 + $0x3c0] sm:$0xff]
    %v666 = vld [vmem:[#allocation8 + $0x3c8] sm:$0xff]
    %v667 = vld [vmem:[#allocation8 + $0x3d0] sm:$0xff]
    %v668 = vld [vmem:[#allocation8 + $0x3d8] sm:$0xff]
    %v669 = vld [vmem:[#allocation8 + $0x3e0] sm:$0xff]
    %v670 = vld [vmem:[#allocation8 + $0x3e8] sm:$0xff]
    %v671 = vld [vmem:[#allocation8 + $0x3f0] sm:$0xff]
    %v672 = vld [vmem:[#allocation8 + $0x3f8] sm:$0xff]
    %v673 = vlaneseq
    %v674 = vshrl.u32 %v673, 7
    %v675 = vsub.s32 0, %v674
    %v676 = vrot.slane %v112, %v675
    %677 = vmatprep.subr.mxu0 0.0
    %678 = vmatpush1.msra.mxu0 %v545
    %679 = vmatprep.subr.mxu0 0.0
    %680 = vmatpush1.msra.mxu0 %v546
    %681 = vmatprep.subr.mxu0 0.0
    %682 = vmatpush1.msra.mxu0 %v547
    %683 = vmatprep.subr.mxu0 0.0
    %684 = vmatpush1.msra.mxu0 %v548
    %685 = vmatprep.subr.mxu0 0.0
    %686 = vmatpush1.msra.mxu0 %v549
    %687 = vmatprep.subr.mxu0 0.0
    %688 = vmatpush1.msra.mxu0 %v550
    %689 = vmatprep.subr.mxu0 0.0
    %690 = vmatpush1.msra.mxu0 %v551
    %691 = vmatprep.subr.mxu0 0.0
    %692 = vmatpush1.msra.mxu0 %v552
    %693 = vmatprep.subr.mxu0 0.0
    %694 = vmatpush1.msra.mxu0 %v553
    %695 = vmatprep.subr.mxu0 0.0
    %696 = vmatpush1.msra.mxu0 %v554
    %697 = vmatprep.subr.mxu0 0.0
    %698 = vmatpush1.msra.mxu0 %v555
    %699 = vmatprep.subr.mxu0 0.0
    %700 = vmatpush1.msra.mxu0 %v556
    %701 = vmatprep.subr.mxu0 0.0
    %702 = vmatpush1.msra.mxu0 %v557
    %703 = vmatprep.subr.mxu0 0.0
    %704 = vmatpush1.msra.mxu0 %v558
    %705 = vmatprep.subr.mxu0 0.0
    %706 = vmatpush1.msra.mxu0 %v559
    %707 = vmatprep.subr.mxu0 0.0
    %708 = vmatpush1.msra.mxu0 %v560
    %709 = vmatprep.subr.mxu0 0.0
    %710 = vmatpush1.msra.mxu0 %v561
    %711 = vmatprep.subr.mxu0 0.0
    %712 = vmatpush1.msra.mxu0 %v562
    %713 = vmatprep.subr.mxu0 0.0
    %714 = vmatpush1.msra.mxu0 %v563
    %715 = vmatprep.subr.mxu0 0.0
    %716 = vmatpush1.msra.mxu0 %v564
    %717 = vmatprep.subr.mxu0 0.0
    %718 = vmatpush1.msra.mxu0 %v565
    %719 = vmatprep.subr.mxu0 0.0
    %720 = vmatpush1.msra.mxu0 %v566
    %721 = vmatprep.subr.mxu0 0.0
    %722 = vmatpush1.msra.mxu0 %v567
    %723 = vmatprep.subr.mxu0 0.0
    %724 = vmatpush1.msra.mxu0 %v568
    %725 = vmatprep.subr.mxu0 0.0
    %726 = vmatpush1.msra.mxu0 %v569
    %727 = vmatprep.subr.mxu0 0.0
    %728 = vmatpush1.msra.mxu0 %v570
    %729 = vmatprep.subr.mxu0 0.0
    %730 = vmatpush1.msra.mxu0 %v571
    %731 = vmatprep.subr.mxu0 0.0
    %732 = vmatpush1.msra.mxu0 %v572
    %733 = vmatprep.subr.mxu0 0.0
    %734 = vmatpush1.msra.mxu0 %v573
    %735 = vmatprep.subr.mxu0 0.0
    %736 = vmatpush1.msra.mxu0 %v574
    %737 = vmatprep.subr.mxu0 0.0
    %738 = vmatpush1.msra.mxu0 %v575
    %739 = vmatprep.subr.mxu0 0.0
    %740 = vmatpush1.msra.mxu0 %v576
    %741 = vmatprep.mubr.f32.mxu0 %v96
    %742 = vmatmul.mubr.f32.gmra.mrb[0].mxu0 %v95
    %v743 = vpop.f32.mrb[0].mxu0
    %v744 = vadd.f32 %v676, %v743
    %v745 = vpop.f32.mrb[0].mxu0
    %746 = vmatprep.mubr.f32.mxu0 %v104
    %747 = vmatmul.mubr.f32.gmra.mrb[0].mxu0 %v103
    %v748 = vpop.f32.mrb[0].mxu0
    %v749 = vadd.f32 %v676, %v748
    %v750 = vpop.f32.mrb[0].mxu0
    %751 = vdwg.mxu0
    %752 = vmatprep.subr.mxu0 0.0
    %753 = vmatpush1.msra.mxu0 %v577
    %754 = vmatprep.subr.mxu0 0.0
    %755 = vmatpush1.msra.mxu0 %v578
    %756 = vmatprep.subr.mxu0 0.0
    %757 = vmatpush1.msra.mxu0 %v579
    %758 = vmatprep.subr.mxu0 0.0
    %759 = vmatpush1.msra.mxu0 %v580
    %760 = vmatprep.subr.mxu0 0.0
    %761 = vmatpush1.msra.mxu0 %v581
    %762 = vmatprep.subr.mxu0 0.0
    %763 = vmatpush1.msra.mxu0 %v582
    %764 = vmatprep.subr.mxu0 0.0
    %765 = vmatpush1.msra.mxu0 %v583
    %766 = vmatprep.subr.mxu0 0.0
    %767 = vmatpush1.msra.mxu0 %v584
    %768 = vmatprep.subr.mxu0 0.0
    %769 = vmatpush1.msra.mxu0 %v585
    %770 = vmatprep.subr.mxu0 0.0
    %771 = vmatpush1.msra.mxu0 %v586
    %772 = vmatprep.subr.mxu0 0.0
    %773 = vmatpush1.msra.mxu0 %v587
    %774 = vmatprep.subr.mxu0 0.0
    %775 = vmatpush1.msra.mxu0 %v588
    %776 = vmatprep.subr.mxu0 0.0
    %777 = vmatpush1.msra.mxu0 %v589
    %778 = vmatprep.subr.mxu0 0.0
    %779 = vmatpush1.msra.mxu0 %v590
    %780 = vmatprep.subr.mxu0 0.0
    %781 = vmatpush1.msra.mxu0 %v591
    %782 = vmatprep.subr.mxu0 0.0
    %783 = vmatpush1.msra.mxu0 %v592
    %784 = vmatprep.subr.mxu0 0.0
    %785 = vmatpush1.msra.mxu0 %v593
    %786 = vmatprep.subr.mxu0 0.0
    %787 = vmatpush1.msra.mxu0 %v594
    %788 = vmatprep.subr.mxu0 0.0
    %789 = vmatpush1.msra.mxu0 %v595
    %790 = vmatprep.subr.mxu0 0.0
    %791 = vmatpush1.msra.mxu0 %v596
    %792 = vmatprep.subr.mxu0 0.0
    %793 = vmatpush1.msra.mxu0 %v597
    %794 = vmatprep.subr.mxu0 0.0
    %795 = vmatpush1.msra.mxu0 %v598
    %796 = vmatprep.subr.mxu0 0.0
    %797 = vmatpush1.msra.mxu0 %v599
    %798 = vmatprep.subr.mxu0 0.0
    %799 = vmatpush1.msra.mxu0 %v600
    %800 = vmatprep.subr.mxu0 0.0
    %801 = vmatpush1.msra.mxu0 %v601
    %802 = vmatprep.subr.mxu0 0.0
    %803 = vmatpush1.msra.mxu0 %v602
    %804 = vmatprep.subr.mxu0 0.0
    %805 = vmatpush1.msra.mxu0 %v603
    %806 = vmatprep.subr.mxu0 0.0
    %807 = vmatpush1.msra.mxu0 %v604
    %808 = vmatprep.subr.mxu0 0.0
    %809 = vmatpush1.msra.mxu0 %v605
    %810 = vmatprep.subr.mxu0 0.0
    %811 = vmatpush1.msra.mxu0 %v606
    %812 = vmatprep.subr.mxu0 0.0
    %813 = vmatpush1.msra.mxu0 %v607
    %814 = vmatprep.subr.mxu0 0.0
    %815 = vmatpush1.msra.mxu0 %v608
    %816 = vmatprep.mubr.f32.mxu0 %v98
    %817 = vmatmul.mubr.f32.gmra.mrb[0].mxu0 %v97
    %v818 = vpop.f32.mrb[0].mxu0
    %v819 = vadd.f32 %v744, %v818
    %v820 = vpop.f32.mrb[0].mxu0
    %821 = vmatprep.mubr.f32.mxu0 %v106
    %822 = vmatmul.mubr.f32.gmra.mrb[0].mxu0 %v105
    %v823 = vpop.f32.mrb[0].mxu0
    %v824 = vadd.f32 %v749, %v823
    %v825 = vpop.f32.mrb[0].mxu0
    %826 = vdwg.mxu0
    %827 = vmatprep.subr.mxu0 0.0
    %828 = vmatpush1.msra.mxu0 %v609
    %829 = vmatprep.subr.mxu0 0.0
    %830 = vmatpush1.msra.mxu0 %v610
    %831 = vmatprep.subr.mxu0 0.0
    %832 = vmatpush1.msra.mxu0 %v611
    %833 = vmatprep.subr.mxu0 0.0
    %834 = vmatpush1.msra.mxu0 %v612
    %835 = vmatprep.subr.mxu0 0.0
    %836 = vmatpush1.msra.mxu0 %v613
    %837 = vmatprep.subr.mxu0 0.0
    %838 = vmatpush1.msra.mxu0 %v614
    %839 = vmatprep.subr.mxu0 0.0
    %840 = vmatpush1.msra.mxu0 %v615
    %841 = vmatprep.subr.mxu0 0.0
    %842 = vmatpush1.msra.mxu0 %v616
    %843 = vmatprep.subr.mxu0 0.0
    %844 = vmatpush1.msra.mxu0 %v617
    %845 = vmatprep.subr.mxu0 0.0
    %846 = vmatpush1.msra.mxu0 %v618
    %847 = vmatprep.subr.mxu0 0.0
    %848 = vmatpush1.msra.mxu0 %v619
    %849 = vmatprep.subr.mxu0 0.0
    %850 = vmatpush1.msra.mxu0 %v620
    %851 = vmatprep.subr.mxu0 0.0
    %852 = vmatpush1.msra.mxu0 %v621
    %853 = vmatprep.subr.mxu0 0.0
    %854 = vmatpush1.msra.mxu0 %v622
    %855 = vmatprep.subr.mxu0 0.0
    %856 = vmatpush1.msra.mxu0 %v623
    %857 = vmatprep.subr.mxu0 0.0
    %858 = vmatpush1.msra.mxu0 %v624
    %859 = vmatprep.subr.mxu0 0.0
    %860 = vmatpush1.msra.mxu0 %v625
    %861 = vmatprep.subr.mxu0 0.0
    %862 = vmatpush1.msra.mxu0 %v626
    %863 = vmatprep.subr.mxu0 0.0
    %864 = vmatpush1.msra.mxu0 %v627
    %865 = vmatprep.subr.mxu0 0.0
    %866 = vmatpush1.msra.mxu0 %v628
    %867 = vmatprep.subr.mxu0 0.0
    %868 = vmatpush1.msra.mxu0 %v629
    %869 = vmatprep.subr.mxu0 0.0
    %870 = vmatpush1.msra.mxu0 %v630
    %871 = vmatprep.subr.mxu0 0.0
    %872 = vmatpush1.msra.mxu0 %v631
    %873 = vmatprep.subr.mxu0 0.0
    %874 = vmatpush1.msra.mxu0 %v632
    %875 = vmatprep.subr.mxu0 0.0
    %876 = vmatpush1.msra.mxu0 %v633
    %877 = vmatprep.subr.mxu0 0.0
    %878 = vmatpush1.msra.mxu0 %v634
    %879 = vmatprep.subr.mxu0 0.0
    %880 = vmatpush1.msra.mxu0 %v635
    %881 = vmatprep.subr.mxu0 0.0
    %882 = vmatpush1.msra.mxu0 %v636
    %883 = vmatprep.subr.mxu0 0.0
    %884 = vmatpush1.msra.mxu0 %v637
    %885 = vmatprep.subr.mxu0 0.0
    %886 = vmatpush1.msra.mxu0 %v638
    %887 = vmatprep.subr.mxu0 0.0
    %888 = vmatpush1.msra.mxu0 %v639
    %889 = vmatprep.subr.mxu0 0.0
    %890 = vmatpush1.msra.mxu0 %v640
    %891 = vmatprep.mubr.f32.mxu0 %v100
    %892 = vmatmul.mubr.f32.gmra.mrb[0].mxu0 %v99
    %v893 = vpop.f32.mrb[0].mxu0
    %v894 = vadd.f32 %v819, %v893
    %v895 = vpop.f32.mrb[0].mxu0
    %896 = vmatprep.mubr.f32.mxu0 %v108
    %897 = vmatmul.mubr.f32.gmra.mrb[0].mxu0 %v107
    %v898 = vpop.f32.mrb[0].mxu0
    %v899 = vadd.f32 %v824, %v898
    %v900 = vpop.f32.mrb[0].mxu0
    %901 = vdwg.mxu0
    %902 = vmatprep.subr.mxu0 0.0
    %903 = vmatpush1.msra.mxu0 %v641
    %904 = vmatprep.subr.mxu0 0.0
    %905 = vmatpush1.msra.mxu0 %v642
    %906 = vmatprep.subr.mxu0 0.0
    %907 = vmatpush1.msra.mxu0 %v643
    %908 = vmatprep.subr.mxu0 0.0
    %909 = vmatpush1.msra.mxu0 %v644
    %910 = vmatprep.subr.mxu0 0.0
    %911 = vmatpush1.msra.mxu0 %v645
    %912 = vmatprep.subr.mxu0 0.0
    %913 = vmatpush1.msra.mxu0 %v646
    %914 = vmatprep.subr.mxu0 0.0
    %915 = vmatpush1.msra.mxu0 %v647
    %916 = vmatprep.subr.mxu0 0.0
    %917 = vmatpush1.msra.mxu0 %v648
    %918 = vmatprep.subr.mxu0 0.0
    %919 = vmatpush1.msra.mxu0 %v649
    %920 = vmatprep.subr.mxu0 0.0
    %921 = vmatpush1.msra.mxu0 %v650
    %922 = vmatprep.subr.mxu0 0.0
    %923 = vmatpush1.msra.mxu0 %v651
    %924 = vmatprep.subr.mxu0 0.0
    %925 = vmatpush1.msra.mxu0 %v652
    %926 = vmatprep.subr.mxu0 0.0
    %927 = vmatpush1.msra.mxu0 %v653
    %928 = vmatprep.subr.mxu0 0.0
    %929 = vmatpush1.msra.mxu0 %v654
    %930 = vmatprep.subr.mxu0 0.0
    %931 = vmatpush1.msra.mxu0 %v655
    %932 = vmatprep.subr.mxu0 0.0
    %933 = vmatpush1.msra.mxu0 %v656
    %934 = vmatprep.subr.mxu0 0.0
    %935 = vmatpush1.msra.mxu0 %v657
    %936 = vmatprep.subr.mxu0 0.0
    %937 = vmatpush1.msra.mxu0 %v658
    %938 = vmatprep.subr.mxu0 0.0
    %939 = vmatpush1.msra.mxu0 %v659
    %940 = vmatprep.subr.mxu0 0.0
    %941 = vmatpush1.msra.mxu0 %v660
    %942 = vmatprep.subr.mxu0 0.0
    %943 = vmatpush1.msra.mxu0 %v661
    %944 = vmatprep.subr.mxu0 0.0
    %945 = vmatpush1.msra.mxu0 %v662
    %946 = vmatprep.subr.mxu0 0.0
    %947 = vmatpush1.msra.mxu0 %v663
    %948 = vmatprep.subr.mxu0 0.0
    %949 = vmatpush1.msra.mxu0 %v664
    %950 = vmatprep.subr.mxu0 0.0
    %951 = vmatpush1.msra.mxu0 %v665
    %952 = vmatprep.subr.mxu0 0.0
    %953 = vmatpush1.msra.mxu0 %v666
    %954 = vmatprep.subr.mxu0 0.0
    %955 = vmatpush1.msra.mxu0 %v667
    %956 = vmatprep.subr.mxu0 0.0
    %957 = vmatpush1.msra.mxu0 %v668
    %958 = vmatprep.subr.mxu0 0.0
    %959 = vmatpush1.msra.mxu0 %v669
    %960 = vmatprep.subr.mxu0 0.0
    %961 = vmatpush1.msra.mxu0 %v670
    %962 = vmatprep.subr.mxu0 0.0
    %963 = vmatpush1.msra.mxu0 %v671
    %964 = vmatprep.subr.mxu0 0.0
    %965 = vmatpush1.msra.mxu0 %v672
    %966 = vmatprep.mubr.f32.mxu0 %v102
    %967 = vmatmul.mubr.f32.gmra.mrb[0].mxu0 %v101
    %v968 = vpop.f32.mrb[0].mxu0
    %v969 = vadd.f32 %v894, %v968
    %v970 = vpop.f32.mrb[0].mxu0
    %971 = vmatprep.mubr.f32.mxu0 %v110
    %972 = vmatmul.mubr.f32.gmra.mrb[0].mxu0 %v109
    %v973 = vpop.f32.mrb[0].mxu0
    %v974 = vadd.f32 %v899, %v973
    %v975 = vpop.f32.mrb[0].mxu0
    %976 = vdwg.mxu0
    %vm977 = vcmask 261120
    %v978 = vsel %vm977, %v537, 0.0
    %979 = vadd.xlane.f32.xlu0 %v978
    %v980 = vpop.xlane.xlu0 %979
    %v981 = vsel %vm977, %v542, 0.0
    %982 = vadd.xlane.f32.xlu0 %v981
    %v983 = vpop.xlane.xlu0 %982
    %v984 = vrcp.pop 32.0
    %v985 = vmul.f32 %v980, %v984
    %v986 = vmul.f32 %v983, %v984
    %v987 = vsub.f32 %v537, %v985
    %v988 = vsub.f32 %v542, %v986
    %v989 = vmul.f32 %v987, %v987
    %v990 = vmul.f32 %v988, %v988
    %v991 = vsel %vm977, %v989, 0.0
    %992 = vadd.xlane.f32.xlu0 %v991
    %v993 = vpop.xlane.xlu0 %992
    %v994 = vsel %vm977, %v990, 0.0
    %995 = vadd.xlane.f32.xlu0 %v994
    %v996 = vpop.xlane.xlu0 %995
    %v997 = vmul.f32 %v993, %v984
    %v998 = vmul.f32 %v996, %v984
    %v999 = vadd.f32 %v997, 1e-05
    %v1000 = vadd.f32 %v998, 1e-05
    %v1001 = vrsqrt.pop %v999
    %v1002 = vrsqrt.pop %v1000
    %v1003 = vmul.f32 %v987, %v1001
    %v1004 = vmul.f32 %v988, %v1002
    %v1005 = vlaneseq
    %v1006 = vshrl.u32 %v1005, 7
    %v1007 = vsub.s32 1, %v1006
    %v1008 = vrot.slane %v111, %v1007
    %v1009 = vmul.f32 %v1003, %v1008
    %v1010 = vmul.f32 %v1004, %v1008
    %v1011 = vlaneseq
    %v1012 = vshrl.u32 %v1011, 7
    %v1013 = vsub.s32 2, %v1012
    %v1014 = vrot.slane %v111, %v1013
    %v1015 = vadd.f32 %v1009, %v1014
    %v1016 = vadd.f32 %v1010, %v1014
    %v1017 = vmax.f32 %v1015, 0.0
    %v1018 = vmax.f32 %v1016, 0.0
    %1021 = vrot.lane.b32.xlu0 %v537, 96
    %v1022 = vpop.permute.xlu0 %1021
    %1023 = vrot.lane.b32.xlu0 %v542, 96
    %v1024 = vpop.permute.xlu0 %1023
    %vm1027 = vcmask 130048
    %v1028 = vsel %vm1027, %v1022, 0.0
    %1029 = vadd.xlane.f32.xlu0 %v1028
    %v1030 = vpop.xlane.xlu0 %1029
    %v1031 = vsel %vm1027, %v1024, 0.0
    %1032 = vadd.xlane.f32.xlu0 %v1031
    %v1033 = vpop.xlane.xlu0 %1032
    %v1034 = vrcp.pop 16.0
    %v1035 = vmul.f32 %v1030, %v1034
    %v1036 = vmul.f32 %v1033, %v1034
    %v1037 = vsub.f32 %v537, %v1035
    %v1038 = vsub.f32 %v542, %v1036
    %v1039 = vmul.f32 %v1037, %v1037
    %v1040 = vmul.f32 %v1038, %v1038
    %1043 = vrot.lane.b32.xlu0 %v1039, 96
    %v1044 = vpop.permute.xlu0 %1043
    %1045 = vrot.lane.b32.xlu0 %v1040, 96
    %v1046 = vpop.permute.xlu0 %1045
    %v1049 = vsel %vm1027, %v1044, 0.0
    %1050 = vadd.xlane.f32.xlu0 %v1049
    %v1051 = vpop.xlane.xlu0 %1050
    %v1052 = vsel %vm1027, %v1046, 0.0
    %1053 = vadd.xlane.f32.xlu0 %v1052
    %v1054 = vpop.xlane.xlu0 %1053
    %v1055 = vmul.f32 %v1051, %v1034
    %v1056 = vmul.f32 %v1054, %v1034
    %v1057 = vadd.f32 %v1055, 1e-05
    %v1058 = vadd.f32 %v1056, 1e-05
    %v1059 = vrsqrt.pop %v1057
    %v1060 = vrsqrt.pop %v1058
    %v1061 = vmul.f32 %v1037, %v1059
    %v1062 = vmul.f32 %v1038, %v1060
    %v1063 = vmul.f32 %v1061, %v1008
    %v1064 = vmul.f32 %v1062, %v1008
    %v1065 = vadd.f32 %v1063, %v1014
    %v1066 = vadd.f32 %v1064, %v1014
    %v1067 = vmax.f32 %v1065, 0.0
    %v1068 = vmax.f32 %v1066, 0.0
    %v1069 = vsel %vm977, %v969, 0.0
    %1070 = vadd.xlane.f32.xlu0 %v1069
    %v1071 = vpop.xlane.xlu0 %1070
    %v1072 = vsel %vm977, %v974, 0.0
    %1073 = vadd.xlane.f32.xlu0 %v1072
    %v1074 = vpop.xlane.xlu0 %1073
    %v1075 = vmul.f32 %v1071, %v984
    %v1076 = vmul.f32 %v1074, %v984
    %v1077 = vsub.f32 %v969, %v1075
    %v1078 = vsub.f32 %v974, %v1076
    %v1079 = vmul.f32 %v1077, %v1077
    %v1080 = vmul.f32 %v1078, %v1078
    %v1081 = vsel %vm977, %v1079, 0.0
    %1082 = vadd.xlane.f32.xlu0 %v1081
    %v1083 = vpop.xlane.xlu0 %1082
    %v1084 = vsel %vm977, %v1080, 0.0
    %1085 = vadd.xlane.f32.xlu0 %v1084
    %v1086 = vpop.xlane.xlu0 %1085
    %v1087 = vmul.f32 %v1083, %v984
    %v1088 = vmul.f32 %v1086, %v984
    %v1089 = vadd.f32 %v1087, 1e-05
    %v1090 = vadd.f32 %v1088, 1e-05
    %v1091 = vrsqrt.pop %v1089
    %v1092 = vrsqrt.pop %v1090
    %v1093 = vmul.f32 %v1077, %v1091
    %v1094 = vmul.f32 %v1078, %v1092
    %v1095 = vlaneseq
    %v1096 = vshrl.u32 %v1095, 7
    %v1097 = vsub.s32 1, %v1096
    %v1098 = vrot.slane %v112, %v1097
    %v1099 = vmul.f32 %v1093, %v1098
    %v1100 = vmul.f32 %v1094, %v1098
    %v1101 = vlaneseq
    %v1102 = vshrl.u32 %v1101, 7
    %v1103 = vsub.s32 2, %v1102
    %v1104 = vrot.slane %v112, %v1103
    %v1105 = vadd.f32 %v1099, %v1104
    %v1106 = vadd.f32 %v1100, %v1104
    %v1107 = vmax.f32 %v1105, 0.0
    %v1108 = vmax.f32 %v1106, 0.0
    %1111 = vrot.lane.b32.xlu0 %v969, 96
    %v1112 = vpop.permute.xlu0 %1111
    %1113 = vrot.lane.b32.xlu0 %v974, 96
    %v1114 = vpop.permute.xlu0 %1113
    %v1117 = vsel %vm1027, %v1112, 0.0
    %1118 = vadd.xlane.f32.xlu0 %v1117
    %v1119 = vpop.xlane.xlu0 %1118
    %v1120 = vsel %vm1027, %v1114, 0.0
    %1121 = vadd.xlane.f32.xlu0 %v1120
    %v1122 = vpop.xlane.xlu0 %1121
    %v1123 = vmul.f32 %v1119, %v1034
    %v1124 = vmul.f32 %v1122, %v1034
    %v1125 = vsub.f32 %v969, %v1123
    %v1126 = vsub.f32 %v974, %v1124
    %v1127 = vmul.f32 %v1125, %v1125
    %v1128 = vmul.f32 %v1126, %v1126
    %1131 = vrot.lane.b32.xlu0 %v1127, 96
    %v1132 = vpop.permute.xlu0 %1131
    %1133 = vrot.lane.b32.xlu0 %v1128, 96
    %v1134 = vpop.permute.xlu0 %1133
    %v1137 = vsel %vm1027, %v1132, 0.0
    %1138 = vadd.xlane.f32.xlu0 %v1137
    %v1139 = vpop.xlane.xlu0 %1138
    %v1140 = vsel %vm1027, %v1134, 0.0
    %1141 = vadd.xlane.f32.xlu0 %v1140
    %v1142 = vpop.xlane.xlu0 %1141
    %v1143 = vmul.f32 %v1139, %v1034
    %v1144 = vmul.f32 %v1142, %v1034
    %v1145 = vadd.f32 %v1143, 1e-05
    %v1146 = vadd.f32 %v1144, 1e-05
    %v1147 = vrsqrt.pop %v1145
    %v1148 = vrsqrt.pop %v1146
    %v1149 = vmul.f32 %v1125, %v1147
    %v1150 = vmul.f32 %v1126, %v1148
    %v1151 = vmul.f32 %v1149, %v1098
    %v1152 = vmul.f32 %v1150, %v1098
    %v1153 = vadd.f32 %v1151, %v1104
    %v1154 = vadd.f32 %v1152, %v1104
    %v1155 = vmax.f32 %v1153, 0.0
    %v1156 = vmax.f32 %v1154, 0.0
    %v1158 = vsel %vm977, %v1017, 0
    %v1161 = vsel %vm977, %v1107, 0
    %1163 = vmatprep.subr.mxu0 0.0
    %1164 = vmatpush1.xpose.msra.mxu0 %v1161
    %1165 = vmatprep.subr.mxu0 0.0
    %1166 = vmatpush1.xpose.msra.mxu0 0.0
    %1167 = vmatprep.subr.mxu0 0.0
    %1168 = vmatpush1.xpose.msra.mxu0 0.0
    %1169 = vmatprep.subr.mxu0 0.0
    %1170 = vmatpush1.xpose.msra.mxu0 0.0
    %1171 = vmatprep.subr.mxu0 0.0
    %1172 = vmatpush1.xpose.msra.mxu0 0.0
    %1173 = vmatprep.subr.mxu0 0.0
    %1174 = vmatpush1.xpose.msra.mxu0 0.0
    %1175 = vmatprep.subr.mxu0 0.0
    %1176 = vmatpush1.xpose.msra.mxu0 0.0
    %1177 = vmatprep.subr.mxu0 0.0
    %1178 = vmatpush1.xpose.msra.mxu0 0.0
    %1179 = vmatprep.subr.mxu0 0.0
    %1180 = vmatpush1.xpose.msra.mxu0 0.0
    %1181 = vmatprep.subr.mxu0 0.0
    %1182 = vmatpush1.xpose.msra.mxu0 0.0
    %1183 = vmatprep.subr.mxu0 0.0
    %1184 = vmatpush1.xpose.msra.mxu0 0.0
    %1185 = vmatprep.subr.mxu0 0.0
    %1186 = vmatpush1.xpose.msra.mxu0 0.0
    %1187 = vmatprep.subr.mxu0 0.0
    %1188 = vmatpush1.xpose.msra.mxu0 0.0
    %1189 = vmatprep.subr.mxu0 0.0
    %1190 = vmatpush1.xpose.msra.mxu0 0.0
    %1191 = vmatprep.subr.mxu0 0.0
    %1192 = vmatpush1.xpose.msra.mxu0 0.0
    %1193 = vmatprep.subr.mxu0 0.0
    %1194 = vmatpush1.xpose.msra.mxu0 0.0
    %1195 = vmatprep.subr.mxu0 0.0
    %1196 = vmatpush1.xpose.msra.mxu0 0.0
    %1197 = vmatprep.subr.mxu0 0.0
    %1198 = vmatpush1.xpose.msra.mxu0 0.0
    %1199 = vmatprep.subr.mxu0 0.0
    %1200 = vmatpush1.xpose.msra.mxu0 0.0
    %1201 = vmatprep.subr.mxu0 0.0
    %1202 = vmatpush1.xpose.msra.mxu0 0.0
    %1203 = vmatprep.subr.mxu0 0.0
    %1204 = vmatpush1.xpose.msra.mxu0 0.0
    %1205 = vmatprep.subr.mxu0 0.0
    %1206 = vmatpush1.xpose.msra.mxu0 0.0
    %1207 = vmatprep.subr.mxu0 0.0
    %1208 = vmatpush1.xpose.msra.mxu0 0.0
    %1209 = vmatprep.subr.mxu0 0.0
    %1210 = vmatpush1.xpose.msra.mxu0 0.0
    %1211 = vmatprep.subr.mxu0 0.0
    %1212 = vmatpush1.xpose.msra.mxu0 0.0
    %1213 = vmatprep.subr.mxu0 0.0
    %1214 = vmatpush1.xpose.msra.mxu0 0.0
    %1215 = vmatprep.subr.mxu0 0.0
    %1216 = vmatpush1.xpose.msra.mxu0 0.0
    %1217 = vmatprep.subr.mxu0 0.0
    %1218 = vmatpush1.xpose.msra.mxu0 0.0
    %1219 = vmatprep.subr.mxu0 0.0
    %1220 = vmatpush1.xpose.msra.mxu0 0.0
    %1221 = vmatprep.subr.mxu0 0.0
    %1222 = vmatpush1.xpose.msra.mxu0 0.0
    %1223 = vmatprep.subr.mxu0 0.0
    %1224 = vmatpush1.xpose.msra.mxu0 0.0
    %1225 = vmatprep.subr.mxu0 0.0
    %1226 = vmatpush1.xpose.msra.mxu0 0.0
    %1227 = vmatprep.mubr.f32.mxu0 0.0
    %1228 = vmatmul.mubr.f32.gmra.mrb[0].mxu0 %v1158
    %v1229 = vpop.f32.mrb[0].mxu0
    %v1230 = vadd.f32 0.0, %v1229
    %v1231 = vpop.f32.mrb[0].mxu0
    %1232 = vdwg.mxu0
    %v1234 = vsel %vm977, %v1018, 0
    %v1237 = vsel %vm977, %v1108, 0
    %1239 = vmatprep.subr.mxu0 0.0
    %1240 = vmatpush1.xpose.msra.mxu0 %v1237
    %1241 = vmatprep.subr.mxu0 0.0
    %1242 = vmatpush1.xpose.msra.mxu0 0.0
    %1243 = vmatprep.subr.mxu0 0.0
    %1244 = vmatpush1.xpose.msra.mxu0 0.0
    %1245 = vmatprep.subr.mxu0 0.0
    %1246 = vmatpush1.xpose.msra.mxu0 0.0
    %1247 = vmatprep.subr.mxu0 0.0
    %1248 = vmatpush1.xpose.msra.mxu0 0.0
    %1249 = vmatprep.subr.mxu0 0.0
    %1250 = vmatpush1.xpose.msra.mxu0 0.0
    %1251 = vmatprep.subr.mxu0 0.0
    %1252 = vmatpush1.xpose.msra.mxu0 0.0
    %1253 = vmatprep.subr.mxu0 0.0
    %1254 = vmatpush1.xpose.msra.mxu0 0.0
    %1255 = vmatprep.subr.mxu0 0.0
    %1256 = vmatpush1.xpose.msra.mxu0 0.0
    %1257 = vmatprep.subr.mxu0 0.0
    %1258 = vmatpush1.xpose.msra.mxu0 0.0
    %1259 = vmatprep.subr.mxu0 0.0
    %1260 = vmatpush1.xpose.msra.mxu0 0.0
    %1261 = vmatprep.subr.mxu0 0.0
    %1262 = vmatpush1.xpose.msra.mxu0 0.0
    %1263 = vmatprep.subr.mxu0 0.0
    %1264 = vmatpush1.xpose.msra.mxu0 0.0
    %1265 = vmatprep.subr.mxu0 0.0
    %1266 = vmatpush1.xpose.msra.mxu0 0.0
    %1267 = vmatprep.subr.mxu0 0.0
    %1268 = vmatpush1.xpose.msra.mxu0 0.0
    %1269 = vmatprep.subr.mxu0 0.0
    %1270 = vmatpush1.xpose.msra.mxu0 0.0
    %1271 = vmatprep.subr.mxu0 0.0
    %1272 = vmatpush1.xpose.msra.mxu0 0.0
    %1273 = vmatprep.subr.mxu0 0.0
    %1274 = vmatpush1.xpose.msra.mxu0 0.0
    %1275 = vmatprep.subr.mxu0 0.0
    %1276 = vmatpush1.xpose.msra.mxu0 0.0
    %1277 = vmatprep.subr.mxu0 0.0
    %1278 = vmatpush1.xpose.msra.mxu0 0.0
    %1279 = vmatprep.subr.mxu0 0.0
    %1280 = vmatpush1.xpose.msra.mxu0 0.0
    %1281 = vmatprep.subr.mxu0 0.0
    %1282 = vmatpush1.xpose.msra.mxu0 0.0
    %1283 = vmatprep.subr.mxu0 0.0
    %1284 = vmatpush1.xpose.msra.mxu0 0.0
    %1285 = vmatprep.subr.mxu0 0.0
    %1286 = vmatpush1.xpose.msra.mxu0 0.0
    %1287 = vmatprep.subr.mxu0 0.0
    %1288 = vmatpush1.xpose.msra.mxu0 0.0
    %1289 = vmatprep.subr.mxu0 0.0
    %1290 = vmatpush1.xpose.msra.mxu0 0.0
    %1291 = vmatprep.subr.mxu0 0.0
    %1292 = vmatpush1.xpose.msra.mxu0 0.0
    %1293 = vmatprep.subr.mxu0 0.0
    %1294 = vmatpush1.xpose.msra.mxu0 0.0
    %1295 = vmatprep.subr.mxu0 0.0
    %1296 = vmatpush1.xpose.msra.mxu0 0.0
    %1297 = vmatprep.subr.mxu0 0.0
    %1298 = vmatpush1.xpose.msra.mxu0 0.0
    %1299 = vmatprep.subr.mxu0 0.0
    %1300 = vmatpush1.xpose.msra.mxu0 0.0
    %1301 = vmatprep.subr.mxu0 0.0
    %1302 = vmatpush1.xpose.msra.mxu0 0.0
    %1303 = vmatprep.mubr.f32.mxu0 0.0
    %1304 = vmatmul.mubr.f32.gmra.mrb[0].mxu0 %v1234
    %v1305 = vpop.f32.mrb[0].mxu0
    %v1306 = vadd.f32 0.0, %v1305
    %v1307 = vpop.f32.mrb[0].mxu0
    %1308 = vdwg.mxu0
    %vm1309 = vcmask 64512
    %v1310 = vsel %vm1309, %v1230, -inf
    %1311 = vmax.xlane.f32.xlu0 %v1310
    %v1312 = vpop.xlane.xlu0 %1311
    %v1313 = vsel %vm1309, %v1306, -inf
    %1314 = vmax.xlane.f32.xlu0 %v1313
    %v1315 = vpop.xlane.xlu0 %1314
    %v1316 = vsub.f32 %v1230, %v1312
    %v1317 = vsub.f32 %v1306, %v1315
    %v1318 = vmul.f32 %v1316, 1.442695
    %v1319 = vpow.pop %v1318
    %v1320 = vmul.f32 %v1317, 1.442695
    %v1321 = vpow.pop %v1320
    %v1322 = vsel %vm1309, %v1319, 0.0
    %1323 = vadd.xlane.f32.xlu0 %v1322
    %v1324 = vpop.xlane.xlu0 %1323
    %v1325 = vsel %vm1309, %v1321, 0.0
    %1326 = vadd.xlane.f32.xlu0 %v1325
    %v1327 = vpop.xlane.xlu0 %1326
    %v1328 = vrcp.pop %v1324
    %v1329 = vrcp.pop %v1327
    %v1330 = vmul.f32 %v1319, %v1328
    %v1331 = vmul.f32 %v1321, %v1329
    %1333 = vrot.lane.b32.xlu0 %v1155, 96
    %v1334 = vpop.permute.xlu0 %1333
    %v1337 = vsel %vm1309, %v1330, 0
    %1339 = vmatprep.subr.mxu0 0.0
    %1340 = vmatpush1.msra.mxu0 %v1334
    %1341 = vmatprep.subr.mxu0 0.0
    %1342 = vmatpush1.msra.mxu0 0.0
    %1343 = vmatprep.subr.mxu0 0.0
    %1344 = vmatpush1.msra.mxu0 0.0
    %1345 = vmatprep.subr.mxu0 0.0
    %1346 = vmatpush1.msra.mxu0 0.0
    %1347 = vmatprep.subr.mxu0 0.0
    %1348 = vmatpush1.msra.mxu0 0.0
    %1349 = vmatprep.subr.mxu0 0.0
    %1350 = vmatpush1.msra.mxu0 0.0
    %1351 = vmatprep.subr.mxu0 0.0
    %1352 = vmatpush1.msra.mxu0 0.0
    %1353 = vmatprep.subr.mxu0 0.0
    %1354 = vmatpush1.msra.mxu0 0.0
    %1355 = vmatprep.subr.mxu0 0.0
    %1356 = vmatpush1.msra.mxu0 0.0
    %1357 = vmatprep.subr.mxu0 0.0
    %1358 = vmatpush1.msra.mxu0 0.0
    %1359 = vmatprep.subr.mxu0 0.0
    %1360 = vmatpush1.msra.mxu0 0.0
    %1361 = vmatprep.subr.mxu0 0.0
    %1362 = vmatpush1.msra.mxu0 0.0
    %1363 = vmatprep.subr.mxu0 0.0
    %1364 = vmatpush1.msra.mxu0 0.0
    %1365 = vmatprep.subr.mxu0 0.0
    %1366 = vmatpush1.msra.mxu0 0.0
    %1367 = vmatprep.subr.mxu0 0.0
    %1368 = vmatpush1.msra.mxu0 0.0
    %1369 = vmatprep.subr.mxu0 0.0
    %1370 = vmatpush1.msra.mxu0 0.0
    %1371 = vmatprep.subr.mxu0 0.0
    %1372 = vmatpush1.msra.mxu0 0.0
    %1373 = vmatprep.subr.mxu0 0.0
    %1374 = vmatpush1.msra.mxu0 0.0
    %1375 = vmatprep.subr.mxu0 0.0
    %1376 = vmatpush1.msra.mxu0 0.0
    %1377 = vmatprep.subr.mxu0 0.0
    %1378 = vmatpush1.msra.mxu0 0.0
    %1379 = vmatprep.subr.mxu0 0.0
    %1380 = vmatpush1.msra.mxu0 0.0
    %1381 = vmatprep.subr.mxu0 0.0
    %1382 = vmatpush1.msra.mxu0 0.0
    %1383 = vmatprep.subr.mxu0 0.0
    %1384 = vmatpush1.msra.mxu0 0.0
    %1385 = vmatprep.subr.mxu0 0.0
    %1386 = vmatpush1.msra.mxu0 0.0
    %1387 = vmatprep.subr.mxu0 0.0
    %1388 = vmatpush1.msra.mxu0 0.0
    %1389 = vmatprep.subr.mxu0 0.0
    %1390 = vmatpush1.msra.mxu0 0.0
    %1391 = vmatprep.subr.mxu0 0.0
    %1392 = vmatpush1.msra.mxu0 0.0
    %1393 = vmatprep.subr.mxu0 0.0
    %1394 = vmatpush1.msra.mxu0 0.0
    %1395 = vmatprep.subr.mxu0 0.0
    %1396 = vmatpush1.msra.mxu0 0.0
    %1397 = vmatprep.subr.mxu0 0.0
    %1398 = vmatpush1.msra.mxu0 0.0
    %1399 = vmatprep.subr.mxu0 0.0
    %1400 = vmatpush1.msra.mxu0 0.0
    %1401 = vmatprep.subr.mxu0 0.0
    %1402 = vmatpush1.msra.mxu0 0.0
    %1403 = vmatprep.mubr.f32.mxu0 0.0
    %1404 = vmatmul.mubr.f32.gmra.mrb[0].mxu0 %v1337
    %v1405 = vpop.f32.mrb[0].mxu0
    %v1406 = vadd.f32 0.0, %v1405
    %v1407 = vpop.f32.mrb[0].mxu0
    %1408 = vdwg.mxu0
    %1410 = vrot.lane.b32.xlu0 %v1156, 96
    %v1411 = vpop.permute.xlu0 %1410
    %v1414 = vsel %vm1309, %v1331, 0
    %1416 = vmatprep.subr.mxu0 0.0
    %1417 = vmatpush1.msra.mxu0 %v1411
    %1418 = vmatprep.subr.mxu0 0.0
    %1419 = vmatpush1.msra.mxu0 0.0
    %1420 = vmatprep.subr.mxu0 0.0
    %1421 = vmatpush1.msra.mxu0 0.0
    %1422 = vmatprep.subr.mxu0 0.0
    %1423 = vmatpush1.msra.mxu0 0.0
    %1424 = vmatprep.subr.mxu0 0.0
    %1425 = vmatpush1.msra.mxu0 0.0
    %1426 = vmatprep.subr.mxu0 0.0
    %1427 = vmatpush1.msra.mxu0 0.0
    %1428 = vmatprep.subr.mxu0 0.0
    %1429 = vmatpush1.msra.mxu0 0.0
    %1430 = vmatprep.subr.mxu0 0.0
    %1431 = vmatpush1.msra.mxu0 0.0
    %1432 = vmatprep.subr.mxu0 0.0
    %1433 = vmatpush1.msra.mxu0 0.0
    %1434 = vmatprep.subr.mxu0 0.0
    %1435 = vmatpush1.msra.mxu0 0.0
    %1436 = vmatprep.subr.mxu0 0.0
    %1437 = vmatpush1.msra.mxu0 0.0
    %1438 = vmatprep.subr.mxu0 0.0
    %1439 = vmatpush1.msra.mxu0 0.0
    %1440 = vmatprep.subr.mxu0 0.0
    %1441 = vmatpush1.msra.mxu0 0.0
    %1442 = vmatprep.subr.mxu0 0.0
    %1443 = vmatpush1.msra.mxu0 0.0
    %1444 = vmatprep.subr.mxu0 0.0
    %1445 = vmatpush1.msra.mxu0 0.0
    %1446 = vmatprep.subr.mxu0 0.0
    %1447 = vmatpush1.msra.mxu0 0.0
    %1448 = vmatprep.subr.mxu0 0.0
    %1449 = vmatpush1.msra.mxu0 0.0
    %1450 = vmatprep.subr.mxu0 0.0
    %1451 = vmatpush1.msra.mxu0 0.0
    %1452 = vmatprep.subr.mxu0 0.0
    %1453 = vmatpush1.msra.mxu0 0.0
    %1454 = vmatprep.subr.mxu0 0.0
    %1455 = vmatpush1.msra.mxu0 0.0
    %1456 = vmatprep.subr.mxu0 0.0
    %1457 = vmatpush1.msra.mxu0 0.0
    %1458 = vmatprep.subr.mxu0 0.0
    %1459 = vmatpush1.msra.mxu0 0.0
    %1460 = vmatprep.subr.mxu0 0.0
    %1461 = vmatpush1.msra.mxu0 0.0
    %1462 = vmatprep.subr.mxu0 0.0
    %1463 = vmatpush1.msra.mxu0 0.0
    %1464 = vmatprep.subr.mxu0 0.0
    %1465 = vmatpush1.msra.mxu0 0.0
    %1466 = vmatprep.subr.mxu0 0.0
    %1467 = vmatpush1.msra.mxu0 0.0
    %1468 = vmatprep.subr.mxu0 0.0
    %1469 = vmatpush1.msra.mxu0 0.0
    %1470 = vmatprep.subr.mxu0 0.0
    %1471 = vmatpush1.msra.mxu0 0.0
    %1472 = vmatprep.subr.mxu0 0.0
    %1473 = vmatpush1.msra.mxu0 0.0
    %1474 = vmatprep.subr.mxu0 0.0
    %1475 = vmatpush1.msra.mxu0 0.0
    %1476 = vmatprep.subr.mxu0 0.0
    %1477 = vmatpush1.msra.mxu0 0.0
    %1478 = vmatprep.subr.mxu0 0.0
    %1479 = vmatpush1.msra.mxu0 0.0
    %1480 = vmatprep.mubr.f32.mxu0 0.0
    %1481 = vmatmul.mubr.f32.gmra.mrb[0].mxu0 %v1414
    %v1482 = vpop.f32.mrb[0].mxu0
    %v1483 = vadd.f32 0.0, %v1482
    %v1484 = vpop.f32.mrb[0].mxu0
    %1485 = vdwg.mxu0
    %1488 = vrot.lane.b32.xlu0 %v1067, 96
    %v1489 = vpop.permute.xlu0 %1488
    %1490 = vrot.lane.b32.xlu0 %v1068, 96
    %v1491 = vpop.permute.xlu0 %1490
    %1494 = vst.msk [vmem:[#allocation10] sm:$0xff] %vm1027, %v1489
    %1495 = vst.msk [vmem:[#allocation10 + $0x8] sm:$0xff] %vm1027, %v1491
    %1498 = vrot.lane.b32.xlu0 %v1406, 16
    %v1499 = vpop.permute.xlu0 %1498
    %1500 = vrot.lane.b32.xlu0 %v1483, 16
    %v1501 = vpop.permute.xlu0 %1500
    %vm1504 = vcmask 261248
    %1505 = vst.msk [vmem:[#allocation10] sm:$0xff] %vm1504, %v1499
    %1506 = vst.msk [vmem:[#allocation10 + $0x8] sm:$0xff] %vm1504, %v1501
    // Predicated region
    $region42: #{tpu_custom_call.1} parent=1 // pred_check
      _
    $region43: #{tpu_custom_call.1} parent=1 // pred_check_branch
      %1508 = sbr.rel (0) target = $region45
    $region44: #{tpu_custom_call.1} parent=1 // pred_region
      %s1510 = ssub.s32 256, 256
      %1511 = vsyncadd [#allocation4], %s1510
      %s1512 = sshll.u32 [#allocation10], 4
      %s1513 = int_to_ptr.vmem [resolvable:$true] %s1512
      %1518 = dma.vmem_to_hbm [thread:$0]  %s1513, 256, %s6, [#allocation4], 128, 128, 8
    $region45: #{tpu_custom_call.1} parent=1 // pred_fallthru
      _
    // Predicated region
    $region46: #{tpu_custom_call.1} parent=1 // pred_check
      _
    $region47: #{tpu_custom_call.1} parent=1 // pred_check_branch
      %1520 = sbr.rel (0) target = $region49
    $region48: #{tpu_custom_call.1} parent=1 // pred_region
      %1521 = dma.done [#allocation4], 256
    $region49: #{tpu_custom_call.1} parent=1 // pred_fallthru
      _
    %1522 = vsyncpa [#allocation3], 1
    %1523 = vsyncpa [#allocation6], 1
    %1524 = vsyncpa [#allocation9], 1
    %1525 = vsyncpa [#allocation4], 1

</llo_original>
